<compile_context>
chip_gen: v7x
topology: tpu7x:2x2x1
jax: 0.10.0
libtpu: 0.0.40
codegen_flags: <defaults>
</compile_context>

<pallas_src>
import jax
import jax.numpy as jnp
from jax.experimental import pallas as pl
from jax.experimental.pallas import tpu as pltpu

# ---------------------------------------------------------------------------
# Model dimensions (from the PyTorch module)
# ---------------------------------------------------------------------------
EMB_DIM = 50             # sinusoidal pos-embedding dim (unused by forward)
SEQ_LEN = 30             # z_t feature dim
LABEL_N, LABEL_D = 6, 10
LEVEL_N, LEVEL_D = 31, 90
AMP_N, AMP_D = 21, 50
IN_D = SEQ_LEN + LABEL_D + LEVEL_D + AMP_D   # 180
FC_IN_D = 128
H1 = 256
H2 = 128
OUT_D = 30
OUT_PAD = 128            # lane-dense output width
ONE_HOT_W = 128          # combined one-hot width (6 + 31 + 21 = 58, padded)

# Merged-bias layout (all offsets/widths are multiples of 128 -> lane aligned)
OFF_B_IN   = 0                      # 128
OFF_B1_RZ  = OFF_B_IN + FC_IN_D     # 512
OFF_B1_NIH = OFF_B1_RZ + 2 * H1     # 256
OFF_B1_NHH = OFF_B1_NIH + H1        # 256
OFF_B2_RZ  = OFF_B1_NHH + H1        # 256
OFF_B2_NIH = OFF_B2_RZ + 2 * H2     # 128
OFF_B2_NHH = OFF_B2_NIH + H2        # 128
OFF_B_OUT  = OFF_B2_NHH + H2        # 128
BIAS_TOTAL = OFF_B_OUT + OUT_PAD    # 1792


def _cdiv(a, b):
    return -(-a // b)


def _round_up(x, m):
    return _cdiv(x, m) * m


def _sigmoid(x):
    # EUP-friendly form: one tanh push, no divide.
    return 0.5 * jnp.tanh(0.5 * x) + 0.5


# ---------------------------------------------------------------------------
# Pallas kernel
# ---------------------------------------------------------------------------
def score_kernel(z_ref, idx_ref,
                 w_z_ref, t_all_ref, w_ih1_ref, w_ih2_ref, w_out_ref, bias_ref,
                 out_ref):
    tb = z_ref.shape[0]

    # --- fc_in, with the three embedding gathers folded into a one-hot matmul
    idx = idx_ref[...]                                             # (TB, 3) i32
    lanes = jax.lax.broadcasted_iota(jnp.int32, (tb, ONE_HOT_W), 1)
    oh = ((lanes == idx[:, 0:1]) |
          (lanes == idx[:, 1:2]) |
          (lanes == idx[:, 2:3]))
    oh = oh.astype(jnp.float32).astype(jnp.bfloat16)               # (TB, 128)

    x = (jnp.dot(z_ref[...], w_z_ref[...],
                 preferred_element_type=jnp.float32)               # (TB, 128)
         + jnp.dot(oh, t_all_ref[...],
                   preferred_element_type=jnp.float32)
         + bias_ref[:, OFF_B_IN:OFF_B_IN + FC_IN_D])
    x = jnp.maximum(x, 0.2 * x)                                    # leaky_relu(0.2)
    xb = x.astype(jnp.bfloat16)

    # --- GRU1 (single step, h0 = 0): h1 = (1 - z) * n; recurrent matmul = 0
    rz1 = _sigmoid(jnp.dot(xb, w_ih1_ref[:, :2 * H1],
                           preferred_element_type=jnp.float32)
                   + bias_ref[:, OFF_B1_RZ:OFF_B1_RZ + 2 * H1])    # (TB, 512)
    n1 = jnp.tanh(jnp.dot(xb, w_ih1_ref[:, 2 * H1:],
                          preferred_element_type=jnp.float32)
                  + bias_ref[:, OFF_B1_NIH:OFF_B1_NIH + H1]
                  + rz1[:, :H1] * bias_ref[:, OFF_B1_NHH:OFF_B1_NHH + H1])
    h1 = ((1.0 - rz1[:, H1:]) * n1).astype(jnp.bfloat16)           # (TB, 256)

    # TODO(synk): nn.Dropout(0.2) is identity at inference; training-mode
    # dropout randomness is not reproduced here.

    # --- GRU2 (single step, h0 = 0)
    rz2 = _sigmoid(jnp.dot(h1, w_ih2_ref[:, :2 * H2],
                           preferred_element_type=jnp.float32)
                   + bias_ref[:, OFF_B2_RZ:OFF_B2_RZ + 2 * H2])    # (TB, 256)
    n2 = jnp.tanh(jnp.dot(h1, w_ih2_ref[:, 2 * H2:],
                          preferred_element_type=jnp.float32)
                  + bias_ref[:, OFF_B2_NIH:OFF_B2_NIH + H2]
                  + rz2[:, :H2] * bias_ref[:, OFF_B2_NHH:OFF_B2_NHH + H2])
    h2 = ((1.0 - rz2[:, H2:]) * n2).astype(jnp.bfloat16)           # (TB, 128)

    # --- fc_out (padded to 128 lanes -> unmasked lane-dense stores)
    out_ref[...] = (jnp.dot(h2, w_out_ref[...],
                            preferred_element_type=jnp.float32)
                    + bias_ref[:, OFF_B_OUT:OFF_B_OUT + OUT_PAD])  # (TB, 128)


# ---------------------------------------------------------------------------
# Parameters
# ---------------------------------------------------------------------------
def init_params(key):
    ks = jax.random.split(key, 13)
    p = {}
    # embeddings ~ N(0, 1), like nn.Embedding default
    p["label_emb"] = jax.random.normal(ks[0], (LABEL_N, LABEL_D), jnp.float32)
    p["level_emb"] = jax.random.normal(ks[1], (LEVEL_N, LEVEL_D), jnp.float32)
    p["amp_emb"] = jax.random.normal(ks[2], (AMP_N, AMP_D), jnp.float32)

    def lin(kw, kb, fan_in, fan_out):
        bound = 1.0 / jnp.sqrt(fan_in)
        w = jax.random.uniform(kw, (fan_in, fan_out), jnp.float32, -bound, bound)
        b = jax.random.uniform(kb, (1, fan_out), jnp.float32, -bound, bound)
        return w, b

    # fc_in: Linear(180, 128), stored transposed (in, out)
    p["w_in"], p["b_in"] = lin(ks[3], ks[4], IN_D, FC_IN_D)
    # GRU1: input 128, hidden 256 -> w_ih (128, 768), gate order [r, z, n]
    bnd1 = 1.0 / jnp.sqrt(H1)
    p["w_ih1"] = jax.random.uniform(ks[5], (FC_IN_D, 3 * H1), jnp.float32, -bnd1, bnd1)
    p["b_ih1"] = jax.random.uniform(ks[6], (1, 3 * H1), jnp.float32, -bnd1, bnd1)
    p["b_hh1"] = jax.random.uniform(ks[7], (1, 3 * H1), jnp.float32, -bnd1, bnd1)
    # GRU2: input 256, hidden 128 -> w_ih (256, 384)
    bnd2 = 1.0 / jnp.sqrt(H2)
    p["w_ih2"] = jax.random.uniform(ks[8], (H1, 3 * H2), jnp.float32, -bnd2, bnd2)
    p["b_ih2"] = jax.random.uniform(ks[9], (1, 3 * H2), jnp.float32, -bnd2, bnd2)
    p["b_hh2"] = jax.random.uniform(ks[10], (1, 3 * H2), jnp.float32, -bnd2, bnd2)
    # fc_out: Linear(128, 30)
    p["w_out"], p["b_out"] = lin(ks[11], ks[12], H2, OUT_D)
    return p


def prepare_kernel_params(p):
    """Fold / merge / cast master params into kernel operands (done once)."""
    w_in = p["w_in"]                                           # (180, 128) f32
    # z_t part of fc_in
    w_z = w_in[:SEQ_LEN].astype(jnp.bfloat16)                  # (30, 128)

    # Fold embedding tables through fc_in:  emb[idx] @ W_slice == onehot @ (E @ W_slice)
    o0 = SEQ_LEN
    o1 = o0 + LABEL_D
    o2 = o1 + LEVEL_D
    t_label = p["label_emb"] @ w_in[o0:o1]                     # (6, 128)
    t_level = p["level_emb"] @ w_in[o1:o2]                     # (31, 128)
    t_amp = p["amp_emb"] @ w_in[o2:]                           # (21, 128)
    t_all = jnp.zeros((ONE_HOT_W, FC_IN_D), jnp.float32)
    t_all = t_all.at[:LABEL_N].set(t_label)
    t_all = t_all.at[LABEL_N:LABEL_N + LEVEL_N].set(t_level)
    t_all = t_all.at[LABEL_N + LEVEL_N:LABEL_N + LEVEL_N + AMP_N].set(t_amp)
    t_all = t_all.astype(jnp.bfloat16)

    w_ih1 = p["w_ih1"].astype(jnp.bfloat16)                    # (128, 768)
    w_ih2 = p["w_ih2"].astype(jnp.bfloat16)                    # (256, 384)
    w_out = jnp.zeros((H2, OUT_PAD), jnp.float32).at[:, :OUT_D].set(p["w_out"])
    w_out = w_out.astype(jnp.bfloat16)                         # (128, 128)

    # Merged bias buffer (f32, lane-aligned slices).  h0 == 0 so the r/z gate
    # biases combine as b_ih + b_hh; the n-gate's b_hh stays separate (r * b_hh_n).
    bias = jnp.zeros((1, BIAS_TOTAL), jnp.float32)
    bias = bias.at[:, OFF_B_IN:OFF_B_IN + FC_IN_D].set(p["b_in"])
    bias = bias.at[:, OFF_B1_RZ:OFF_B1_RZ + 2 * H1].set(
        p["b_ih1"][:, :2 * H1] + p["b_hh1"][:, :2 * H1])
    bias = bias.at[:, OFF_B1_NIH:OFF_B1_NIH + H1].set(p["b_ih1"][:, 2 * H1:])
    bias = bias.at[:, OFF_B1_NHH:OFF_B1_NHH + H1].set(p["b_hh1"][:, 2 * H1:])
    bias = bias.at[:, OFF_B2_RZ:OFF_B2_RZ + 2 * H2].set(
        p["b_ih2"][:, :2 * H2] + p["b_hh2"][:, :2 * H2])
    bias = bias.at[:, OFF_B2_NIH:OFF_B2_NIH + H2].set(p["b_ih2"][:, 2 * H2:])
    bias = bias.at[:, OFF_B2_NHH:OFF_B2_NHH + H2].set(p["b_hh2"][:, 2 * H2:])
    bias = bias.at[:, OFF_B_OUT:OFF_B_OUT + OUT_D].set(p["b_out"])

    return (w_z, t_all, w_ih1, w_ih2, w_out, bias)


# ---------------------------------------------------------------------------
# Forward
# ---------------------------------------------------------------------------
def _choose_tiles(batch):
    """Near-full batch tiles; >=2 grid steps when B > 8 (engages both v7x TCs)."""
    max_tb = 512
    n_tiles = max(2, _cdiv(batch, max_tb)) if batch > 8 else 1
    tb = _round_up(_cdiv(batch, n_tiles), 8)
    return tb, n_tiles * tb


def score_model_forward(kparams, z_t, t, labels, levels, amps):
    # t and the sinusoidal positional embedding are unused in the reference forward.
    del t
    B = z_t.shape[0]
    TB, B_pad = _choose_tiles(B)
    grid = (B_pad // TB,)

    # Kernel inputs: bf16 z_t and one tiny i32 index block (combined row
    # offsets into the fused embedding table) -- no gather/concat/pad ops.
    z_bf = z_t.astype(jnp.bfloat16)                                   # (B, 30)
    idx = jnp.stack([labels.astype(jnp.int32),
                     levels.astype(jnp.int32) + LABEL_N,
                     amps.astype(jnp.int32) + LABEL_N + LEVEL_N],
                    axis=-1)                                          # (B, 3)
    if B_pad != B:
        z_bf = jnp.zeros((B_pad, SEQ_LEN), jnp.bfloat16).at[:B].set(z_bf)
        idx = jnp.zeros((B_pad, 3), jnp.int32).at[:B].set(idx)

    # Weights/biases: full blocks, constant index_map -> VMEM-resident across
    # all grid steps (no re-DMA per batch tile).
    weight_specs = [pl.BlockSpec(w.shape, lambda i: (0, 0)) for w in kparams]

    flops = 2 * B_pad * (SEQ_LEN * FC_IN_D + ONE_HOT_W * FC_IN_D
                         + FC_IN_D * 3 * H1 + H1 * 3 * H2 + H2 * OUT_PAD)
    transcendentals = B_pad * 3 * (H1 + H2)
    weight_bytes = sum(int(w.size) * w.dtype.itemsize for w in kparams)
    bytes_accessed = weight_bytes + B_pad * (SEQ_LEN * 2 + 3 * 4 + OUT_PAD * 4)

    # TODO(synk): when called once per diffusion timestep, the ~0.5 MiB weight
    # DMA could be hidden via cross-call prefetch (P10).
    out = pl.pallas_call(
        score_kernel,
        out_shape=jax.ShapeDtypeStruct((B_pad, OUT_PAD), jnp.float32),
        grid=grid,
        in_specs=[pl.BlockSpec((TB, SEQ_LEN), lambda i: (i, 0)),
                  pl.BlockSpec((TB, 3), lambda i: (i, 0))] + weight_specs,
        out_specs=pl.BlockSpec((TB, OUT_PAD), lambda i: (i, 0)),
        compiler_params=pltpu.CompilerParams(
            dimension_semantics=("parallel",)),
        cost_estimate=pl.CostEstimate(
            flops=int(flops),
            transcendentals=int(transcendentals),
            bytes_accessed=int(bytes_accessed)),
    )(z_bf, idx, *kparams)

    # Final slice to the logical (B, 30) score (consumed directly by the caller).
    return out[:B, :OUT_D]


score_model_forward_jit = jax.jit(score_model_forward)


# ---------------------------------------------------------------------------
# Pure-JAX f32 reference with the original PyTorch semantics (gather + concat
# + fc_in + single-step GRUs with h0 = 0 + fc_out) for correctness checking.
# ---------------------------------------------------------------------------
def reference_forward(p, z_t, labels, levels, amps):
    lab = jnp.take(p["label_emb"], labels, axis=0)
    lev = jnp.take(p["level_emb"], levels, axis=0)
    amp = jnp.take(p["amp_emb"], amps, axis=0)
    z = jnp.concatenate([z_t, lab, lev, amp], axis=-1)          # (B, 180)
    x = z @ p["w_in"] + p["b_in"]
    x = jnp.where(x > 0, x, 0.2 * x)

    gi = x @ p["w_ih1"]
    r1 = jax.nn.sigmoid(gi[:, :H1] + p["b_ih1"][:, :H1] + p["b_hh1"][:, :H1])
    z1 = jax.nn.sigmoid(gi[:, H1:2 * H1] + p["b_ih1"][:, H1:2 * H1]
                        + p["b_hh1"][:, H1:2 * H1])
    n1 = jnp.tanh(gi[:, 2 * H1:] + p["b_ih1"][:, 2 * H1:]
                  + r1 * p["b_hh1"][:, 2 * H1:])
    h1 = (1.0 - z1) * n1

    gi2 = h1 @ p["w_ih2"]
    r2 = jax.nn.sigmoid(gi2[:, :H2] + p["b_ih2"][:, :H2] + p["b_hh2"][:, :H2])
    z2 = jax.nn.sigmoid(gi2[:, H2:2 * H2] + p["b_ih2"][:, H2:2 * H2]
                        + p["b_hh2"][:, H2:2 * H2])
    n2 = jnp.tanh(gi2[:, 2 * H2:] + p["b_ih2"][:, 2 * H2:]
                  + r2 * p["b_hh2"][:, 2 * H2:])
    h2 = (1.0 - z2) * n2
    return h2 @ p["w_out"] + p["b_out"]


if __name__ == "__main__":
    key = jax.random.PRNGKey(0)
    k_param, k_z, k_l, k_v, k_a, k_t = jax.random.split(key, 6)

    params = init_params(k_param)
    kparams = prepare_kernel_params(params)

    B = 8
    z_t = jax.random.normal(k_z, (B, SEQ_LEN), jnp.float32)         # (8, 30)
    t = jax.random.uniform(k_t, (B,), jnp.float32)                  # unused by forward
    labels = jax.random.randint(k_l, (B,), 0, LABEL_N, jnp.int32)   # (8,)
    levels = jax.random.randint(k_v, (B,), 0, LEVEL_N, jnp.int32)   # (8,)
    amps = jax.random.randint(k_a, (B,), 0, AMP_N, jnp.int32)       # (8,)

    score = score_model_forward_jit(kparams, z_t, t, labels, levels, amps)
    score = jax.block_until_ready(score)
    assert score.shape == (B, OUT_D) and score.dtype == jnp.float32

    ref = jax.block_until_ready(reference_forward(params, z_t, labels, levels, amps))
    max_err = float(jnp.max(jnp.abs(score - ref)))
    assert jnp.allclose(score, ref, atol=3e-2, rtol=3e-2), max_err

    print("KERNEL_OK")
</pallas_src>

<mosaic_0001>
module attributes {stable_mosaic.version = 11 : i64} {
  func.func @score_kernel(%arg0: i32, %arg1: memref<8x30xbf16, #tpu.memory_space<vmem>>, %arg2: memref<8x3xi32, #tpu.memory_space<vmem>>, %arg3: memref<30x128xbf16, #tpu.memory_space<vmem>>, %arg4: memref<128x128xbf16, #tpu.memory_space<vmem>>, %arg5: memref<128x768xbf16, #tpu.memory_space<vmem>>, %arg6: memref<256x384xbf16, #tpu.memory_space<vmem>>, %arg7: memref<128x128xbf16, #tpu.memory_space<vmem>>, %arg8: memref<1x1792xf32, #tpu.memory_space<vmem>>, %arg9: memref<8x128xf32, #tpu.memory_space<vmem>>) attributes {dimension_semantics = [#tpu.dimension_semantics<parallel>], iteration_bounds = array<i64: 1>, scalar_prefetch = 0 : i64, scratch_operands = 0 : i64, tpu.core_type = #tpu.core_type<tc>, window_params = [{transform_indices = @transform_0, window_bounds = array<i64: 8, 30>}, {transform_indices = @transform_1, window_bounds = array<i64: 8, 3>}, {pipeline_mode = #tpu.pipeline_mode<synchronous>, transform_indices = @transform_2, window_bounds = array<i64: 30, 128>}, {pipeline_mode = #tpu.pipeline_mode<synchronous>, transform_indices = @transform_3, window_bounds = array<i64: 128, 128>}, {pipeline_mode = #tpu.pipeline_mode<synchronous>, transform_indices = @transform_4, window_bounds = array<i64: 128, 768>}, {pipeline_mode = #tpu.pipeline_mode<synchronous>, transform_indices = @transform_5, window_bounds = array<i64: 256, 384>}, {pipeline_mode = #tpu.pipeline_mode<synchronous>, transform_indices = @transform_6, window_bounds = array<i64: 128, 128>}, {pipeline_mode = #tpu.pipeline_mode<synchronous>, transform_indices = @transform_7, window_bounds = array<i64: 1, 1792>}, {transform_indices = @transform_8, window_bounds = array<i64: 8, 128>}]} {
    %c0 = arith.constant 0 : index
    %c0_0 = arith.constant 0 : index
    %0 = vector.load %arg2[%c0, %c0_0] : memref<8x3xi32, #tpu.memory_space<vmem>>, vector<8x3xi32>
    %1 = tpu.iota {dimensions = array<i32: 1>} : vector<8x128xi32>
    %2 = vector.extract_strided_slice %0 {offsets = [0, 0], sizes = [8, 1], strides = [1, 1]} : vector<8x3xi32> to vector<8x1xi32>
    %3 = vector.broadcast %2 : vector<8x1xi32> to vector<8x128xi32>
    %4 = arith.cmpi eq, %1, %3 : vector<8x128xi32>
    %5 = vector.extract_strided_slice %0 {offsets = [0, 1], sizes = [8, 1], strides = [1, 1]} : vector<8x3xi32> to vector<8x1xi32>
    %6 = vector.broadcast %5 : vector<8x1xi32> to vector<8x128xi32>
    %7 = arith.cmpi eq, %1, %6 : vector<8x128xi32>
    %8 = arith.ori %4, %7 : vector<8x128xi1>
    %9 = vector.extract_strided_slice %0 {offsets = [0, 2], sizes = [8, 1], strides = [1, 1]} : vector<8x3xi32> to vector<8x1xi32>
    %10 = vector.broadcast %9 : vector<8x1xi32> to vector<8x128xi32>
    %11 = arith.cmpi eq, %1, %10 : vector<8x128xi32>
    %12 = arith.ori %8, %11 : vector<8x128xi1>
    %13 = arith.extui %12 : vector<8x128xi1> to vector<8x128xi32>
    %14 = arith.sitofp %13 : vector<8x128xi32> to vector<8x128xf32>
    %15 = arith.truncf %14 : vector<8x128xf32> to vector<8x128xbf16>
    %c0_1 = arith.constant 0 : index
    %c0_2 = arith.constant 0 : index
    %16 = vector.load %arg1[%c0_1, %c0_2] : memref<8x30xbf16, #tpu.memory_space<vmem>>, vector<8x30xbf16>
    %c0_3 = arith.constant 0 : index
    %c0_4 = arith.constant 0 : index
    %17 = vector.load %arg3[%c0_3, %c0_4] : memref<30x128xbf16, #tpu.memory_space<vmem>>, vector<30x128xbf16>
    %cst = arith.constant dense<0.000000e+00> : vector<8x128xf32>
    %18 = tpu.matmul %16, %17, %cst {dimension_numbers = #tpu.dot_dimension_numbers<[1], [0], [0], [1], [0, 0, 1, 1], [], []>} : vector<8x30xbf16>, vector<30x128xbf16>, vector<8x128xf32> -> vector<8x128xf32>
    %c0_5 = arith.constant 0 : index
    %c0_6 = arith.constant 0 : index
    %19 = vector.load %arg4[%c0_5, %c0_6] : memref<128x128xbf16, #tpu.memory_space<vmem>>, vector<128x128xbf16>
    %cst_7 = arith.constant dense<0.000000e+00> : vector<8x128xf32>
    %20 = tpu.matmul %15, %19, %cst_7 {dimension_numbers = #tpu.dot_dimension_numbers<[1], [0], [0], [1], [0, 0, 1, 1], [], []>} : vector<8x128xbf16>, vector<128x128xbf16>, vector<8x128xf32> -> vector<8x128xf32>
    %21 = arith.addf %18, %20 : vector<8x128xf32>
    %c0_8 = arith.constant 0 : index
    %c0_9 = arith.constant 0 : index
    %22 = vector.load %arg8[%c0_8, %c0_9] : memref<1x1792xf32, #tpu.memory_space<vmem>>, vector<1x128xf32>
    %23 = vector.broadcast %22 : vector<1x128xf32> to vector<8x128xf32>
    %24 = arith.addf %21, %23 : vector<8x128xf32>
    %cst_10 = arith.constant 2.000000e-01 : f32
    %25 = vector.broadcast %cst_10 : f32 to vector<8x128xf32>
    %26 = arith.mulf %25, %24 : vector<8x128xf32>
    %27 = arith.maximumf %24, %26 : vector<8x128xf32>
    %28 = arith.truncf %27 : vector<8x128xf32> to vector<8x128xbf16>
    %c0_11 = arith.constant 0 : index
    %c0_12 = arith.constant 0 : index
    %29 = vector.load %arg5[%c0_11, %c0_12] : memref<128x768xbf16, #tpu.memory_space<vmem>>, vector<128x512xbf16>
    %cst_13 = arith.constant dense<0.000000e+00> : vector<8x512xf32>
    %30 = tpu.matmul %28, %29, %cst_13 {dimension_numbers = #tpu.dot_dimension_numbers<[1], [0], [0], [1], [0, 0, 1, 1], [], []>} : vector<8x128xbf16>, vector<128x512xbf16>, vector<8x512xf32> -> vector<8x512xf32>
    %c0_14 = arith.constant 0 : index
    %c128 = arith.constant 128 : index
    %31 = vector.load %arg8[%c0_14, %c128] : memref<1x1792xf32, #tpu.memory_space<vmem>>, vector<1x512xf32>
    %32 = vector.broadcast %31 : vector<1x512xf32> to vector<8x512xf32>
    %33 = arith.addf %30, %32 : vector<8x512xf32>
    %cst_15 = arith.constant 5.000000e-01 : f32
    %34 = vector.broadcast %cst_15 : f32 to vector<8x512xf32>
    %35 = arith.mulf %34, %33 : vector<8x512xf32>
    %36 = math.tanh %35 : vector<8x512xf32>
    %cst_16 = arith.constant 5.000000e-01 : f32
    %37 = vector.broadcast %cst_16 : f32 to vector<8x512xf32>
    %38 = arith.mulf %37, %36 : vector<8x512xf32>
    %cst_17 = arith.constant 5.000000e-01 : f32
    %39 = vector.broadcast %cst_17 : f32 to vector<8x512xf32>
    %40 = arith.addf %38, %39 : vector<8x512xf32>
    %c0_18 = arith.constant 0 : index
    %c512 = arith.constant 512 : index
    %41 = vector.load %arg5[%c0_18, %c512] : memref<128x768xbf16, #tpu.memory_space<vmem>>, vector<128x256xbf16>
    %cst_19 = arith.constant dense<0.000000e+00> : vector<8x256xf32>
    %42 = tpu.matmul %28, %41, %cst_19 {dimension_numbers = #tpu.dot_dimension_numbers<[1], [0], [0], [1], [0, 0, 1, 1], [], []>} : vector<8x128xbf16>, vector<128x256xbf16>, vector<8x256xf32> -> vector<8x256xf32>
    %c0_20 = arith.constant 0 : index
    %c640 = arith.constant 640 : index
    %43 = vector.load %arg8[%c0_20, %c640] : memref<1x1792xf32, #tpu.memory_space<vmem>>, vector<1x256xf32>
    %44 = vector.broadcast %43 : vector<1x256xf32> to vector<8x256xf32>
    %45 = arith.addf %42, %44 : vector<8x256xf32>
    %46 = vector.extract_strided_slice %40 {offsets = [0, 0], sizes = [8, 256], strides = [1, 1]} : vector<8x512xf32> to vector<8x256xf32>
    %c0_21 = arith.constant 0 : index
    %c896 = arith.constant 896 : index
    %47 = vector.load %arg8[%c0_21, %c896] : memref<1x1792xf32, #tpu.memory_space<vmem>>, vector<1x256xf32>
    %48 = vector.broadcast %47 : vector<1x256xf32> to vector<8x256xf32>
    %49 = arith.mulf %46, %48 : vector<8x256xf32>
    %50 = arith.addf %45, %49 : vector<8x256xf32>
    %51 = math.tanh %50 : vector<8x256xf32>
    %52 = vector.extract_strided_slice %40 {offsets = [0, 256], sizes = [8, 256], strides = [1, 1]} : vector<8x512xf32> to vector<8x256xf32>
    %cst_22 = arith.constant 1.000000e+00 : f32
    %53 = vector.broadcast %cst_22 : f32 to vector<8x256xf32>
    %54 = arith.subf %53, %52 : vector<8x256xf32>
    %55 = arith.mulf %54, %51 : vector<8x256xf32>
    %56 = arith.truncf %55 : vector<8x256xf32> to vector<8x256xbf16>
    %c0_23 = arith.constant 0 : index
    %c0_24 = arith.constant 0 : index
    %57 = vector.load %arg6[%c0_23, %c0_24] : memref<256x384xbf16, #tpu.memory_space<vmem>>, vector<256x256xbf16>
    %cst_25 = arith.constant dense<0.000000e+00> : vector<8x256xf32>
    %58 = tpu.matmul %56, %57, %cst_25 {dimension_numbers = #tpu.dot_dimension_numbers<[1], [0], [0], [1], [0, 0, 1, 1], [], []>} : vector<8x256xbf16>, vector<256x256xbf16>, vector<8x256xf32> -> vector<8x256xf32>
    %c0_26 = arith.constant 0 : index
    %c1152 = arith.constant 1152 : index
    %59 = vector.load %arg8[%c0_26, %c1152] : memref<1x1792xf32, #tpu.memory_space<vmem>>, vector<1x256xf32>
    %60 = vector.broadcast %59 : vector<1x256xf32> to vector<8x256xf32>
    %61 = arith.addf %58, %60 : vector<8x256xf32>
    %cst_27 = arith.constant 5.000000e-01 : f32
    %62 = vector.broadcast %cst_27 : f32 to vector<8x256xf32>
    %63 = arith.mulf %62, %61 : vector<8x256xf32>
    %64 = math.tanh %63 : vector<8x256xf32>
    %cst_28 = arith.constant 5.000000e-01 : f32
    %65 = vector.broadcast %cst_28 : f32 to vector<8x256xf32>
    %66 = arith.mulf %65, %64 : vector<8x256xf32>
    %cst_29 = arith.constant 5.000000e-01 : f32
    %67 = vector.broadcast %cst_29 : f32 to vector<8x256xf32>
    %68 = arith.addf %66, %67 : vector<8x256xf32>
    %c0_30 = arith.constant 0 : index
    %c256 = arith.constant 256 : index
    %69 = vector.load %arg6[%c0_30, %c256] : memref<256x384xbf16, #tpu.memory_space<vmem>>, vector<256x128xbf16>
    %cst_31 = arith.constant dense<0.000000e+00> : vector<8x128xf32>
    %70 = tpu.matmul %56, %69, %cst_31 {dimension_numbers = #tpu.dot_dimension_numbers<[1], [0], [0], [1], [0, 0, 1, 1], [], []>} : vector<8x256xbf16>, vector<256x128xbf16>, vector<8x128xf32> -> vector<8x128xf32>
    %c0_32 = arith.constant 0 : index
    %c1408 = arith.constant 1408 : index
    %71 = vector.load %arg8[%c0_32, %c1408] : memref<1x1792xf32, #tpu.memory_space<vmem>>, vector<1x128xf32>
    %72 = vector.broadcast %71 : vector<1x128xf32> to vector<8x128xf32>
    %73 = arith.addf %70, %72 : vector<8x128xf32>
    %74 = vector.extract_strided_slice %68 {offsets = [0, 0], sizes = [8, 128], strides = [1, 1]} : vector<8x256xf32> to vector<8x128xf32>
    %c0_33 = arith.constant 0 : index
    %c1536 = arith.constant 1536 : index
    %75 = vector.load %arg8[%c0_33, %c1536] : memref<1x1792xf32, #tpu.memory_space<vmem>>, vector<1x128xf32>
    %76 = vector.broadcast %75 : vector<1x128xf32> to vector<8x128xf32>
    %77 = arith.mulf %74, %76 : vector<8x128xf32>
    %78 = arith.addf %73, %77 : vector<8x128xf32>
    %79 = math.tanh %78 : vector<8x128xf32>
    %80 = vector.extract_strided_slice %68 {offsets = [0, 128], sizes = [8, 128], strides = [1, 1]} : vector<8x256xf32> to vector<8x128xf32>
    %cst_34 = arith.constant 1.000000e+00 : f32
    %81 = vector.broadcast %cst_34 : f32 to vector<8x128xf32>
    %82 = arith.subf %81, %80 : vector<8x128xf32>
    %83 = arith.mulf %82, %79 : vector<8x128xf32>
    %84 = arith.truncf %83 : vector<8x128xf32> to vector<8x128xbf16>
    %c0_35 = arith.constant 0 : index
    %c0_36 = arith.constant 0 : index
    %85 = vector.load %arg7[%c0_35, %c0_36] : memref<128x128xbf16, #tpu.memory_space<vmem>>, vector<128x128xbf16>
    %cst_37 = arith.constant dense<0.000000e+00> : vector<8x128xf32>
    %86 = tpu.matmul %84, %85, %cst_37 {dimension_numbers = #tpu.dot_dimension_numbers<[1], [0], [0], [1], [0, 0, 1, 1], [], []>} : vector<8x128xbf16>, vector<128x128xbf16>, vector<8x128xf32> -> vector<8x128xf32>
    %c0_38 = arith.constant 0 : index
    %c1664 = arith.constant 1664 : index
    %87 = vector.load %arg8[%c0_38, %c1664] : memref<1x1792xf32, #tpu.memory_space<vmem>>, vector<1x128xf32>
    %88 = vector.broadcast %87 : vector<1x128xf32> to vector<8x128xf32>
    %89 = arith.addf %86, %88 : vector<8x128xf32>
    %c0_39 = arith.constant 0 : index
    %c0_40 = arith.constant 0 : index
    %90 = vector.load %arg9[%c0_39, %c0_40] : memref<8x128xf32, #tpu.memory_space<vmem>>, vector<8x128xf32>
    tpu.vector_store %arg9[%c0_39, %c0_40], %89 {strides = array<i32>} : memref<8x128xf32, #tpu.memory_space<vmem>>, vector<8x128xf32>,
    return
  }
  func.func @transform_0(%arg0: i32) -> (i32, i32) {
    %c0_i32 = arith.constant 0 : i32
    %c0_i32_0 = arith.constant 0 : i32
    return %arg0, %c0_i32 : i32, i32
  }
  func.func @transform_1(%arg0: i32) -> (i32, i32) {
    %c0_i32 = arith.constant 0 : i32
    %c0_i32_0 = arith.constant 0 : i32
    return %arg0, %c0_i32 : i32, i32
  }
  func.func @transform_2(%arg0: i32) -> (i32, i32) {
    %c0_i32 = arith.constant 0 : i32
    %c0_i32_0 = arith.constant 0 : i32
    %c0_i32_1 = arith.constant 0 : i32
    return %c0_i32, %c0_i32_0 : i32, i32
  }
  func.func @transform_3(%arg0: i32) -> (i32, i32) {
    %c0_i32 = arith.constant 0 : i32
    %c0_i32_0 = arith.constant 0 : i32
    %c0_i32_1 = arith.constant 0 : i32
    return %c0_i32, %c0_i32_0 : i32, i32
  }
  func.func @transform_4(%arg0: i32) -> (i32, i32) {
    %c0_i32 = arith.constant 0 : i32
    %c0_i32_0 = arith.constant 0 : i32
    %c0_i32_1 = arith.constant 0 : i32
    return %c0_i32, %c0_i32_0 : i32, i32
  }
  func.func @transform_5(%arg0: i32) -> (i32, i32) {
    %c0_i32 = arith.constant 0 : i32
    %c0_i32_0 = arith.constant 0 : i32
    %c0_i32_1 = arith.constant 0 : i32
    return %c0_i32, %c0_i32_0 : i32, i32
  }
  func.func @transform_6(%arg0: i32) -> (i32, i32) {
    %c0_i32 = arith.constant 0 : i32
    %c0_i32_0 = arith.constant 0 : i32
    %c0_i32_1 = arith.constant 0 : i32
    return %c0_i32, %c0_i32_0 : i32, i32
  }
  func.func @transform_7(%arg0: i32) -> (i32, i32) {
    %c0_i32 = arith.constant 0 : i32
    %c0_i32_0 = arith.constant 0 : i32
    %c0_i32_1 = arith.constant 0 : i32
    return %c0_i32, %c0_i32_0 : i32, i32
  }
  func.func @transform_8(%arg0: i32) -> (i32, i32) {
    %c0_i32 = arith.constant 0 : i32
    %c0_i32_0 = arith.constant 0 : i32
    return %arg0, %c0_i32 : i32, i32
  }
}

</mosaic_0001>

<llo_original>
// kernel: score_model_forward.1
$region0: #{score_model_forward.1}
  #allocation0 [shape = 'u32[]', space=smem, size = 0x4, offset = 0x4, fixed_abs, tag = 'smem constant byte address 0x4 - core index']
  #allocation1 [shape = 'u32[144,128]{1,0:T(1,128)}', space=vmem, size = 0x12000, scoped, tag = 'internal scratch']
  %s0 = inlined_call_operand.vmem [shape: bf16[8,30], index: 0, kind: input, shape index: {}]
  %s1 = inlined_call_operand.vmem [shape: s32[8,3], index: 1, kind: input, shape index: {}]
  %s2 = inlined_call_operand.vmem [shape: bf16[30,128], index: 2, kind: input, shape index: {}]
  %s3 = inlined_call_operand.vmem [shape: bf16[128,128], index: 3, kind: input, shape index: {}]
  %s4 = inlined_call_operand.hbm [shape: bf16[128,768], index: 4, kind: input, shape index: {}]
  %s5 = inlined_call_operand.hbm [shape: bf16[256,384], index: 5, kind: input, shape index: {}]
  %s6 = inlined_call_operand.hbm [shape: bf16[128,128], index: 6, kind: input, shape index: {}]
  %s7 = inlined_call_operand.vmem [shape: f32[1,1792], index: 7, kind: input, shape index: {}]
  %s8 = inlined_call_operand.hbm [shape: f32[8,128], index: 8, kind: output, shape index: {}]
  %s9 = sld [smem:[#allocation0]]
  $region54: #{score_model_forward.1} parent=0
    _
  %s11 = ssub.s32 1, %s9
  %s12 = scalar_select 0, %s11, %s9
  $region1: #{score_model_forward.1} parent=0
    #allocation2 [shape = 'u8[196608]{0}', space=vmem, size = 0x30000, scoped, tag = 'input window, operand 4, single buffered']
    #allocation3 [shape = 's32[1]{0}', space=sflag, size = 0x4, scoped, tag = 'scoped memory for score_model_forward.1']
    #allocation4 [shape = 's32[1]{0}', space=sflag, size = 0x4, scoped, tag = 'scoped memory for score_model_forward.1']
    #allocation5 [shape = 'u8[196608]{0}', space=vmem, size = 0x30000, scoped, tag = 'input window, operand 5, single buffered']
    #allocation6 [shape = 's32[1]{0}', space=sflag, size = 0x4, scoped, tag = 'scoped memory for score_model_forward.1']
    #allocation7 [shape = 'u8[32768]{0}', space=vmem, size = 0x8000, scoped, tag = 'input window, operand 6, single buffered']
    #allocation8 [shape = 'u8[4096]{0}', space=vmem, size = 0x1000, scoped, tag = 'output window, operand 0, single buffered']
    %13 = vsyncpa [#allocation3], 0
    %14 = vsyncpa [#allocation6], 0
    %15 = vsyncpa [#allocation4], 0
    // Predicated region
    $region2: #{score_model_forward.1} parent=1 // pred_check
      _
    $region3: #{score_model_forward.1} parent=1 // pred_check_branch
      %17 = sbr.rel (0) target = $region5
    $region4: #{score_model_forward.1} parent=1 // pred_region
      _
    $region5: #{score_model_forward.1} parent=1 // pred_fallthru
      _
    // Predicated region
    $region6: #{score_model_forward.1} parent=1 // pred_check
      _
    $region7: #{score_model_forward.1} parent=1 // pred_check_branch
      %19 = sbr.rel (0) target = $region9
    $region8: #{score_model_forward.1} parent=1 // pred_region
      _
    $region9: #{score_model_forward.1} parent=1 // pred_fallthru
      _
    // Predicated region
    $region10: #{score_model_forward.1} parent=1 // pred_check
      _
    $region11: #{score_model_forward.1} parent=1 // pred_check_branch
      %21 = sbr.rel (0) target = $region13
    $region12: #{score_model_forward.1} parent=1 // pred_region
      _
    $region13: #{score_model_forward.1} parent=1 // pred_fallthru
      _
    // Predicated region
    $region14: #{score_model_forward.1} parent=1 // pred_check
      _
    $region15: #{score_model_forward.1} parent=1 // pred_check_branch
      %23 = sbr.rel (0) target = $region17
    $region16: #{score_model_forward.1} parent=1 // pred_region
      _
    $region17: #{score_model_forward.1} parent=1 // pred_fallthru
      _
    // Predicated region
    $region18: #{score_model_forward.1} parent=1 // pred_check
      _
    $region19: #{score_model_forward.1} parent=1 // pred_check_branch
      %25 = sbr.rel (0) target = $region21
    $region20: #{score_model_forward.1} parent=1 // pred_region
      %s27 = ssub.s32 6144, 6144
      %28 = vsyncadd [#allocation3], %s27
      %s29 = sshll.u32 [#allocation2], 4
      %s30 = int_to_ptr.vmem [resolvable:$true] %s29
      %35 = dma.hbm_to_vmem [thread:$0]  %s4, 6144, %s30, [#allocation3], 384, 384, 24
    $region21: #{score_model_forward.1} parent=1 // pred_fallthru
      _
    // Predicated region
    $region22: #{score_model_forward.1} parent=1 // pred_check
      _
    $region23: #{score_model_forward.1} parent=1 // pred_check_branch
      %37 = sbr.rel (0) target = $region25
    $region24: #{score_model_forward.1} parent=1 // pred_region
      %s39 = ssub.s32 6144, 6144
      %40 = vsyncadd [#allocation6], %s39
      %s41 = sshll.u32 [#allocation5], 4
      %s42 = int_to_ptr.vmem [resolvable:$true] %s41
      %47 = dma.hbm_to_vmem [thread:$0]  %s5, 6144, %s42, [#allocation6], 192, 192, 12
    $region25: #{score_model_forward.1} parent=1 // pred_fallthru
      _
    // Predicated region
    $region26: #{score_model_forward.1} parent=1 // pred_check
      _
    $region27: #{score_model_forward.1} parent=1 // pred_check_branch
      %49 = sbr.rel (0) target = $region29
    $region28: #{score_model_forward.1} parent=1 // pred_region
      %s51 = ssub.s32 1024, 1024
      %52 = vsyncadd [#allocation6], %s51
      %s53 = sshll.u32 [#allocation7], 4
      %s54 = int_to_ptr.vmem [resolvable:$true] %s53
      %59 = dma.hbm_to_vmem [thread:$0]  %s6, 1024, %s54, [#allocation6], 64, 64, 4
    $region29: #{score_model_forward.1} parent=1 // pred_fallthru
      _
    // Predicated region
    $region30: #{score_model_forward.1} parent=1 // pred_check
      _
    $region31: #{score_model_forward.1} parent=1 // pred_check_branch
      %61 = sbr.rel (0) target = $region33
    $region32: #{score_model_forward.1} parent=1 // pred_region
      _
    $region33: #{score_model_forward.1} parent=1 // pred_fallthru
      _
    // Predicated region
    $region34: #{score_model_forward.1} parent=1 // pred_check
      _
    $region35: #{score_model_forward.1} parent=1 // pred_check_branch
      %63 = sbr.rel (0) target = $region37
    $region36: #{score_model_forward.1} parent=1 // pred_region
      %64 = dma.done [#allocation3], 6144
    $region37: #{score_model_forward.1} parent=1 // pred_fallthru
      _
    // Predicated region
    $region38: #{score_model_forward.1} parent=1 // pred_check
      _
    $region39: #{score_model_forward.1} parent=1 // pred_check_branch
      %66 = sbr.rel (0) target = $region41
    $region40: #{score_model_forward.1} parent=1 // pred_region
      %67 = dma.done [#allocation6], 6144
    $region41: #{score_model_forward.1} parent=1 // pred_fallthru
      _
    // Predicated region
    $region42: #{score_model_forward.1} parent=1 // pred_check
      _
    $region43: #{score_model_forward.1} parent=1 // pred_check_branch
      %69 = sbr.rel (0) target = $region45
    $region44: #{score_model_forward.1} parent=1 // pred_region
      %70 = dma.done [#allocation6], 1024
    $region45: #{score_model_forward.1} parent=1 // pred_fallthru
      _
    %v72 = vld [vmem:[%s1] sm:$0xff]
    %v73 = vlaneseq
    %v74 = vand.u32 %v73, 127
    %75 = vset.pattern.permute.xlu0 0
    %76 = vperm.xlu0 %75, %v72
    %v77 = vpop.permute.xlu0 %76
    %vm78 = vcmp.eq.s32.totalorder %v74, %v77
    %79 = vset.pattern.permute.xlu0 1
    %80 = vperm.xlu0 %79, %v72
    %v81 = vpop.permute.xlu0 %80
    %vm82 = vcmp.eq.s32.totalorder %v74, %v81
    %vm83 = vmor %vm78, %vm82
    %84 = vset.pattern.permute.xlu0 2
    %85 = vperm.xlu0 %84, %v72
    %v86 = vpop.permute.xlu0 %85
    %vm87 = vcmp.eq.s32.totalorder %v74, %v86
    %vm88 = vmor %vm83, %vm87
    %v89 = vsel %vm88, 1, 0
    %v90 = vcvt.s32.f32 %v89
    %v91 = vpack.c.bf16 %v90, %v90
    %v92 = vld [vmem:[%s0] sm:$0xf]
    %v93 = vld [vmem:[%s2] sm:$0xf]
    %v94 = vld [vmem:[%s2 + $0x4] sm:$0xf]
    %v95 = vld [vmem:[%s2 + $0x8] sm:$0xf]
    %v96 = vld [vmem:[%s2 + $0xc] sm:$0x7]
    %v97 = vld [vmem:[%s3] sm:$0xf]
    %v98 = vld [vmem:[%s3 + $0x4] sm:$0xf]
    %v99 = vld [vmem:[%s3 + $0x8] sm:$0xf]
    %v100 = vld [vmem:[%s3 + $0xc] sm:$0xf]
    %v101 = vld [vmem:[%s3 + $0x10] sm:$0xf]
    %v102 = vld [vmem:[%s3 + $0x14] sm:$0xf]
    %v103 = vld [vmem:[%s3 + $0x18] sm:$0xf]
    %v104 = vld [vmem:[%s3 + $0x1c] sm:$0xf]
    %v105 = vld [vmem:[%s3 + $0x20] sm:$0xf]
    %v106 = vld [vmem:[%s3 + $0x24] sm:$0xf]
    %v107 = vld [vmem:[%s3 + $0x28] sm:$0xf]
    %v108 = vld [vmem:[%s3 + $0x2c] sm:$0xf]
    %v109 = vld [vmem:[%s3 + $0x30] sm:$0xf]
    %v110 = vld [vmem:[%s3 + $0x34] sm:$0xf]
    %v111 = vld [vmem:[%s3 + $0x38] sm:$0xf]
    %v112 = vld [vmem:[%s3 + $0x3c] sm:$0xf]
    %v129 = vunpack.c.l.b16 %v97
    %v130 = vunpack.c.l.b16 %v98
    %v131 = vunpack.c.l.b16 %v99
    %v132 = vunpack.c.l.b16 %v100
    %v133 = vunpack.c.l.b16 %v101
    %v134 = vunpack.c.l.b16 %v102
    %v135 = vunpack.c.l.b16 %v103
    %v136 = vunpack.c.l.b16 %v104
    %v137 = vunpack.c.l.b16 %v105
    %v138 = vunpack.c.l.b16 %v106
    %v139 = vunpack.c.l.b16 %v107
    %v140 = vunpack.c.l.b16 %v108
    %v141 = vunpack.c.l.b16 %v109
    %v142 = vunpack.c.l.b16 %v110
    %v143 = vunpack.c.l.b16 %v111
    %v144 = vunpack.c.l.b16 %v112
    %v145 = vpack.c.b16 %v130, %v129
    %v146 = vpack.c.b16 %v132, %v131
    %v147 = vpack.c.b16 %v134, %v133
    %v148 = vpack.c.b16 %v136, %v135
    %v149 = vpack.c.b16 %v138, %v137
    %v150 = vpack.c.b16 %v140, %v139
    %v151 = vpack.c.b16 %v142, %v141
    %v152 = vpack.c.b16 %v144, %v143
    %161 = vmatprep.subr.bf16.mxu0 0
    %162 = vmatpush1.bf16.msra.mxu0 %v145
    %163 = vmatprep.subr.bf16.mxu0 0
    %164 = vmatpush1.bf16.msra.mxu0 %v146
    %165 = vmatprep.subr.bf16.mxu0 0
    %166 = vmatpush1.bf16.msra.mxu0 %v147
    %167 = vmatprep.subr.bf16.mxu0 0
    %168 = vmatpush1.bf16.msra.mxu0 %v148
    %169 = vmatprep.subr.bf16.mxu0 0
    %170 = vmatpush1.bf16.msra.mxu0 %v149
    %171 = vmatprep.subr.bf16.mxu0 0
    %172 = vmatpush1.bf16.msra.mxu0 %v150
    %173 = vmatprep.subr.bf16.mxu0 0
    %174 = vmatpush1.bf16.msra.mxu0 %v151
    %175 = vmatprep.subr.bf16.mxu0 0
    %176 = vmatpush1.bf16.msra.mxu0 %v152
    %177 = vmatprep.subr.bf16.mxu0 0
    %178 = vmatpush1.bf16.msra.mxu0 0
    %179 = vmatprep.subr.bf16.mxu0 0
    %180 = vmatpush1.bf16.msra.mxu0 0
    %181 = vmatprep.subr.bf16.mxu0 0
    %182 = vmatpush1.bf16.msra.mxu0 0
    %183 = vmatprep.subr.bf16.mxu0 0
    %184 = vmatpush1.bf16.msra.mxu0 0
    %185 = vmatprep.subr.bf16.mxu0 0
    %186 = vmatpush1.bf16.msra.mxu0 0
    %187 = vmatprep.subr.bf16.mxu0 0
    %188 = vmatpush1.bf16.msra.mxu0 0
    %189 = vmatprep.subr.bf16.mxu0 0
    %190 = vmatpush1.bf16.msra.mxu0 0
    %191 = vmatprep.subr.bf16.mxu0 0
    %192 = vmatpush1.bf16.msra.mxu0 0
    %193 = vmatprep.mubr.bf16.mxu0 0
    %194 = vmatmul.mubr.bf16.gmra.mrb[0].mxu0 %v91
    %v195 = vpop.f32.mrb[0].mxu0
    %v196 = vadd.f32 0.0, %v195
    %v197 = vpop.f32.mrb[0].mxu0
    %v198 = vpop.f32.mrb[0].mxu0
    %v199 = vpop.f32.mrb[0].mxu0
    %200 = vdwg.mxu0
    %v205 = vunpack.c.l.b16 %v93
    %v206 = vunpack.c.l.b16 %v94
    %v207 = vunpack.c.l.b16 %v95
    %v208 = vunpack.c.l.b16 %v96
    %v209 = vpack.c.b16 %v206, %v205
    %v210 = vpack.c.b16 %v208, %v207
    %vm212 = vcmask 244736
    %v214 = vsel %vm212, %v92, 0
    %vm216 = vcmask 1046528
    %v218 = vsel %vm216, %v210, 0
    %220 = vmatprep.subr.bf16.mxu0 0
    %221 = vmatpush1.bf16.msra.mxu0 %v209
    %222 = vmatprep.subr.bf16.mxu0 0
    %223 = vmatpush1.bf16.msra.mxu0 %v218
    %224 = vmatprep.subr.bf16.mxu0 0
    %225 = vmatpush1.bf16.msra.mxu0 0
    %226 = vmatprep.subr.bf16.mxu0 0
    %227 = vmatpush1.bf16.msra.mxu0 0
    %228 = vmatprep.subr.bf16.mxu0 0
    %229 = vmatpush1.bf16.msra.mxu0 0
    %230 = vmatprep.subr.bf16.mxu0 0
    %231 = vmatpush1.bf16.msra.mxu0 0
    %232 = vmatprep.subr.bf16.mxu0 0
    %233 = vmatpush1.bf16.msra.mxu0 0
    %234 = vmatprep.subr.bf16.mxu0 0
    %235 = vmatpush1.bf16.msra.mxu0 0
    %236 = vmatprep.subr.bf16.mxu0 0
    %237 = vmatpush1.bf16.msra.mxu0 0
    %238 = vmatprep.subr.bf16.mxu0 0
    %239 = vmatpush1.bf16.msra.mxu0 0
    %240 = vmatprep.subr.bf16.mxu0 0
    %241 = vmatpush1.bf16.msra.mxu0 0
    %242 = vmatprep.subr.bf16.mxu0 0
    %243 = vmatpush1.bf16.msra.mxu0 0
    %244 = vmatprep.subr.bf16.mxu0 0
    %245 = vmatpush1.bf16.msra.mxu0 0
    %246 = vmatprep.subr.bf16.mxu0 0
    %247 = vmatpush1.bf16.msra.mxu0 0
    %248 = vmatprep.subr.bf16.mxu0 0
    %249 = vmatpush1.bf16.msra.mxu0 0
    %250 = vmatprep.subr.bf16.mxu0 0
    %251 = vmatpush1.bf16.msra.mxu0 0
    %252 = vmatprep.mubr.bf16.mxu0 0
    %253 = vmatmul.mubr.bf16.gmra.mrb[0].mxu0 %v214
    %v254 = vpop.f32.mrb[0].mxu0
    %v255 = vadd.f32 %v196, %v254
    %v256 = vpop.f32.mrb[0].mxu0
    %v257 = vpop.f32.mrb[0].mxu0
    %v258 = vpop.f32.mrb[0].mxu0
    %259 = vdwg.mxu0
    %v260 = vld [vmem:[%s7] sm:$0x1]
    %v262 = vlaneseq
    %v263 = vshrl.u32 %v262, 7
    %v264 = vsub.s32 0, %v263
    %v265 = vrot.slane %v260, %v264
    %v267 = vadd.f32 %v255, %v265
    %v268 = vmul.f32 %v267, 0.2
    %v269 = vmax.f32 %v267, %v268
    %v270 = vpack.c.bf16 %v269, %v269
    %v271 = vld [vmem:[#allocation2] sm:$0xff]
    %v272 = vld [vmem:[#allocation2 + $0x8] sm:$0xff]
    %v273 = vld [vmem:[#allocation2 + $0x18] sm:$0xff]
    %v274 = vld [vmem:[#allocation2 + $0x20] sm:$0xff]
    %v275 = vld [vmem:[#allocation2 + $0x30] sm:$0xff]
    %v276 = vld [vmem:[#allocation2 + $0x38] sm:$0xff]
    %v277 = vld [vmem:[#allocation2 + $0x48] sm:$0xff]
    %v278 = vld [vmem:[#allocation2 + $0x50] sm:$0xff]
    %v279 = vld [vmem:[#allocation2 + $0x60] sm:$0xff]
    %v280 = vld [vmem:[#allocation2 + $0x68] sm:$0xff]
    %v281 = vld [vmem:[#allocation2 + $0x78] sm:$0xff]
    %v282 = vld [vmem:[#allocation2 + $0x80] sm:$0xff]
    %v283 = vld [vmem:[#allocation2 + $0x90] sm:$0xff]
    %v284 = vld [vmem:[#allocation2 + $0x98] sm:$0xff]
    %v285 = vld [vmem:[#allocation2 + $0xa8] sm:$0xff]
    %v286 = vld [vmem:[#allocation2 + $0xb0] sm:$0xff]
    %v287 = vld [vmem:[#allocation2 + $0xc0] sm:$0xff]
    %v288 = vld [vmem:[#allocation2 + $0xc8] sm:$0xff]
    %v289 = vld [vmem:[#allocation2 + $0xd8] sm:$0xff]
    %v290 = vld [vmem:[#allocation2 + $0xe0] sm:$0xff]
    %v291 = vld [vmem:[#allocation2 + $0xf0] sm:$0xff]
    %v292 = vld [vmem:[#allocation2 + $0xf8] sm:$0xff]
    %v293 = vld [vmem:[#allocation2 + $0x108] sm:$0xff]
    %v294 = vld [vmem:[#allocation2 + $0x110] sm:$0xff]
    %v295 = vld [vmem:[#allocation2 + $0x120] sm:$0xff]
    %v296 = vld [vmem:[#allocation2 + $0x128] sm:$0xff]
    %v297 = vld [vmem:[#allocation2 + $0x138] sm:$0xff]
    %v298 = vld [vmem:[#allocation2 + $0x140] sm:$0xff]
    %v299 = vld [vmem:[#allocation2 + $0x150] sm:$0xff]
    %v300 = vld [vmem:[#allocation2 + $0x158] sm:$0xff]
    %v301 = vld [vmem:[#allocation2 + $0x168] sm:$0xff]
    %v302 = vld [vmem:[#allocation2 + $0x170] sm:$0xff]
    %v303 = vld [vmem:[%s7 + $0x1] sm:$0xf]
    %v305 = vlaneseq
    %v306 = vshrl.u32 %v305, 7
    %v307 = vsub.s32 0, %v306
    %v308 = vrot.slane %v303, %v307
    %v309 = vlaneseq
    %v310 = vshrl.u32 %v309, 7
    %v311 = vsub.s32 1, %v310
    %v312 = vrot.slane %v303, %v311
    %v313 = vlaneseq
    %v314 = vshrl.u32 %v313, 7
    %v315 = vsub.s32 2, %v314
    %v316 = vrot.slane %v303, %v315
    %v317 = vlaneseq
    %v318 = vshrl.u32 %v317, 7
    %v319 = vsub.s32 3, %v318
    %v320 = vrot.slane %v303, %v319
    %v357 = vunpack.c.l.b16 %v271
    %v358 = vunpack.c.h.b16 %v271
    %v359 = vunpack.c.l.b16 %v272
    %v360 = vunpack.c.h.b16 %v272
    %v361 = vunpack.c.l.b16 %v273
    %v362 = vunpack.c.h.b16 %v273
    %v363 = vunpack.c.l.b16 %v274
    %v364 = vunpack.c.h.b16 %v274
    %v365 = vunpack.c.l.b16 %v275
    %v366 = vunpack.c.h.b16 %v275
    %v367 = vunpack.c.l.b16 %v276
    %v368 = vunpack.c.h.b16 %v276
    %v369 = vunpack.c.l.b16 %v277
    %v370 = vunpack.c.h.b16 %v277
    %v371 = vunpack.c.l.b16 %v278
    %v372 = vunpack.c.h.b16 %v278
    %v373 = vunpack.c.l.b16 %v279
    %v374 = vunpack.c.h.b16 %v279
    %v375 = vunpack.c.l.b16 %v280
    %v376 = vunpack.c.h.b16 %v280
    %v377 = vunpack.c.l.b16 %v281
    %v378 = vunpack.c.h.b16 %v281
    %v379 = vunpack.c.l.b16 %v282
    %v380 = vunpack.c.h.b16 %v282
    %v381 = vunpack.c.l.b16 %v283
    %v382 = vunpack.c.h.b16 %v283
    %v383 = vunpack.c.l.b16 %v284
    %v384 = vunpack.c.h.b16 %v284
    %v385 = vunpack.c.l.b16 %v285
    %v386 = vunpack.c.h.b16 %v285
    %v387 = vunpack.c.l.b16 %v286
    %v388 = vunpack.c.h.b16 %v286
    %v389 = vunpack.c.l.b16 %v287
    %v390 = vunpack.c.h.b16 %v287
    %v391 = vunpack.c.l.b16 %v288
    %v392 = vunpack.c.h.b16 %v288
    %v393 = vunpack.c.l.b16 %v289
    %v394 = vunpack.c.h.b16 %v289
    %v395 = vunpack.c.l.b16 %v290
    %v396 = vunpack.c.h.b16 %v290
    %v397 = vunpack.c.l.b16 %v291
    %v398 = vunpack.c.h.b16 %v291
    %v399 = vunpack.c.l.b16 %v292
    %v400 = vunpack.c.h.b16 %v292
    %v401 = vunpack.c.l.b16 %v293
    %v402 = vunpack.c.h.b16 %v293
    %v403 = vunpack.c.l.b16 %v294
    %v404 = vunpack.c.h.b16 %v294
    %v405 = vunpack.c.l.b16 %v295
    %v406 = vunpack.c.h.b16 %v295
    %v407 = vunpack.c.l.b16 %v296
    %v408 = vunpack.c.h.b16 %v296
    %v409 = vunpack.c.l.b16 %v297
    %v410 = vunpack.c.h.b16 %v297
    %v411 = vunpack.c.l.b16 %v298
    %v412 = vunpack.c.h.b16 %v298
    %v413 = vunpack.c.l.b16 %v299
    %v414 = vunpack.c.h.b16 %v299
    %v415 = vunpack.c.l.b16 %v300
    %v416 = vunpack.c.h.b16 %v300
    %v417 = vunpack.c.l.b16 %v301
    %v418 = vunpack.c.h.b16 %v301
    %v419 = vunpack.c.l.b16 %v302
    %v420 = vunpack.c.h.b16 %v302
    %v421 = vpack.c.b16 %v361, %v357
    %v422 = vpack.c.b16 %v362, %v358
    %v423 = vpack.c.b16 %v363, %v359
    %v424 = vpack.c.b16 %v364, %v360
    %v425 = vpack.c.b16 %v369, %v365
    %v426 = vpack.c.b16 %v370, %v366
    %v427 = vpack.c.b16 %v371, %v367
    %v428 = vpack.c.b16 %v372, %v368
    %v429 = vpack.c.b16 %v377, %v373
    %v430 = vpack.c.b16 %v378, %v374
    %v431 = vpack.c.b16 %v379, %v375
    %v432 = vpack.c.b16 %v380, %v376
    %v433 = vpack.c.b16 %v385, %v381
    %v434 = vpack.c.b16 %v386, %v382
    %v435 = vpack.c.b16 %v387, %v383
    %v436 = vpack.c.b16 %v388, %v384
    %v437 = vpack.c.b16 %v393, %v389
    %v438 = vpack.c.b16 %v394, %v390
    %v439 = vpack.c.b16 %v395, %v391
    %v440 = vpack.c.b16 %v396, %v392
    %v441 = vpack.c.b16 %v401, %v397
    %v442 = vpack.c.b16 %v402, %v398
    %v443 = vpack.c.b16 %v403, %v399
    %v444 = vpack.c.b16 %v404, %v400
    %v445 = vpack.c.b16 %v409, %v405
    %v446 = vpack.c.b16 %v410, %v406
    %v447 = vpack.c.b16 %v411, %v407
    %v448 = vpack.c.b16 %v412, %v408
    %v449 = vpack.c.b16 %v417, %v413
    %v450 = vpack.c.b16 %v418, %v414
    %v451 = vpack.c.b16 %v419, %v415
    %v452 = vpack.c.b16 %v420, %v416
    %485 = vmatprep.subr.bf16.mxu0 %v422
    %486 = vmatpush1.bf16.msra.mxu0 %v421
    %487 = vmatprep.subr.bf16.mxu0 %v426
    %488 = vmatpush1.bf16.msra.mxu0 %v425
    %489 = vmatprep.subr.bf16.mxu0 %v430
    %490 = vmatpush1.bf16.msra.mxu0 %v429
    %491 = vmatprep.subr.bf16.mxu0 %v434
    %492 = vmatpush1.bf16.msra.mxu0 %v433
    %493 = vmatprep.subr.bf16.mxu0 %v438
    %494 = vmatpush1.bf16.msra.mxu0 %v437
    %495 = vmatprep.subr.bf16.mxu0 %v442
    %496 = vmatpush1.bf16.msra.mxu0 %v441
    %497 = vmatprep.subr.bf16.mxu0 %v446
    %498 = vmatpush1.bf16.msra.mxu0 %v445
    %499 = vmatprep.subr.bf16.mxu0 %v450
    %500 = vmatpush1.bf16.msra.mxu0 %v449
    %501 = vmatprep.subr.bf16.mxu0 0
    %502 = vmatpush1.bf16.msra.mxu0 0
    %503 = vmatprep.subr.bf16.mxu0 0
    %504 = vmatpush1.bf16.msra.mxu0 0
    %505 = vmatprep.subr.bf16.mxu0 0
    %506 = vmatpush1.bf16.msra.mxu0 0
    %507 = vmatprep.subr.bf16.mxu0 0
    %508 = vmatpush1.bf16.msra.mxu0 0
    %509 = vmatprep.subr.bf16.mxu0 0
    %510 = vmatpush1.bf16.msra.mxu0 0
    %511 = vmatprep.subr.bf16.mxu0 0
    %512 = vmatpush1.bf16.msra.mxu0 0
    %513 = vmatprep.subr.bf16.mxu0 0
    %514 = vmatpush1.bf16.msra.mxu0 0
    %515 = vmatprep.subr.bf16.mxu0 0
    %516 = vmatpush1.bf16.msra.mxu0 0
    %517 = vmatprep.mubr.bf16.mxu0 0
    %518 = vmatmul.mubr.bf16.gmra.mrb[0].mxu0 %v270
    %v519 = vpop.f32.mrb[0].mxu0
    %v520 = vadd.f32 %v308, %v519
    %v521 = vpop.f32.mrb[0].mxu0
    %v522 = vadd.f32 %v312, %v521
    %v523 = vpop.f32.mrb[0].mxu0
    %v524 = vpop.f32.mrb[0].mxu0
    %525 = vdwg.mxu0
    %526 = vmatprep.subr.bf16.mxu0 %v424
    %527 = vmatpush1.bf16.msra.mxu0 %v423
    %528 = vmatprep.subr.bf16.mxu0 %v428
    %529 = vmatpush1.bf16.msra.mxu0 %v427
    %530 = vmatprep.subr.bf16.mxu0 %v432
    %531 = vmatpush1.bf16.msra.mxu0 %v431
    %532 = vmatprep.subr.bf16.mxu0 %v436
    %533 = vmatpush1.bf16.msra.mxu0 %v435
    %534 = vmatprep.subr.bf16.mxu0 %v440
    %535 = vmatpush1.bf16.msra.mxu0 %v439
    %536 = vmatprep.subr.bf16.mxu0 %v444
    %537 = vmatpush1.bf16.msra.mxu0 %v443
    %538 = vmatprep.subr.bf16.mxu0 %v448
    %539 = vmatpush1.bf16.msra.mxu0 %v447
    %540 = vmatprep.subr.bf16.mxu0 %v452
    %541 = vmatpush1.bf16.msra.mxu0 %v451
    %542 = vmatprep.subr.bf16.mxu0 0
    %543 = vmatpush1.bf16.msra.mxu0 0
    %544 = vmatprep.subr.bf16.mxu0 0
    %545 = vmatpush1.bf16.msra.mxu0 0
    %546 = vmatprep.subr.bf16.mxu0 0
    %547 = vmatpush1.bf16.msra.mxu0 0
    %548 = vmatprep.subr.bf16.mxu0 0
    %549 = vmatpush1.bf16.msra.mxu0 0
    %550 = vmatprep.subr.bf16.mxu0 0
    %551 = vmatpush1.bf16.msra.mxu0 0
    %552 = vmatprep.subr.bf16.mxu0 0
    %553 = vmatpush1.bf16.msra.mxu0 0
    %554 = vmatprep.subr.bf16.mxu0 0
    %555 = vmatpush1.bf16.msra.mxu0 0
    %556 = vmatprep.subr.bf16.mxu0 0
    %557 = vmatpush1.bf16.msra.mxu0 0
    %558 = vmatprep.mubr.bf16.mxu0 0
    %559 = vmatmul.mubr.bf16.gmra.mrb[0].mxu0 %v270
    %v560 = vpop.f32.mrb[0].mxu0
    %v561 = vadd.f32 %v316, %v560
    %v562 = vpop.f32.mrb[0].mxu0
    %v563 = vadd.f32 %v320, %v562
    %v564 = vpop.f32.mrb[0].mxu0
    %v565 = vpop.f32.mrb[0].mxu0
    %566 = vdwg.mxu0
    %v567 = vmul.f32 %v520, 0.5
    %v568 = vmul.f32 %v522, 0.5
    %v569 = vmul.f32 %v561, 0.5
    %v570 = vmul.f32 %v563, 0.5
    %v571 = vtanh.pop %v567
    %v572 = vtanh.pop %v568
    %v573 = vtanh.pop %v569
    %v574 = vtanh.pop %v570
    %v575 = vmul.f32 %v571, 0.5
    %v576 = vmul.f32 %v572, 0.5
    %v577 = vmul.f32 %v573, 0.5
    %v578 = vmul.f32 %v574, 0.5
    %v579 = vadd.f32 %v575, 0.5
    %v580 = vadd.f32 %v576, 0.5
    %v581 = vadd.f32 %v577, 0.5
    %v582 = vadd.f32 %v578, 0.5
    %v583 = vld [vmem:[#allocation2 + $0x10] sm:$0xff]
    %v584 = vld [vmem:[#allocation2 + $0x28] sm:$0xff]
    %v585 = vld [vmem:[#allocation2 + $0x40] sm:$0xff]
    %v586 = vld [vmem:[#allocation2 + $0x58] sm:$0xff]
    %v587 = vld [vmem:[#allocation2 + $0x70] sm:$0xff]
    %v588 = vld [vmem:[#allocation2 + $0x88] sm:$0xff]
    %v589 = vld [vmem:[#allocation2 + $0xa0] sm:$0xff]
    %v590 = vld [vmem:[#allocation2 + $0xb8] sm:$0xff]
    %v591 = vld [vmem:[#allocation2 + $0xd0] sm:$0xff]
    %v592 = vld [vmem:[#allocation2 + $0xe8] sm:$0xff]
    %v593 = vld [vmem:[#allocation2 + $0x100] sm:$0xff]
    %v594 = vld [vmem:[#allocation2 + $0x118] sm:$0xff]
    %v595 = vld [vmem:[#allocation2 + $0x130] sm:$0xff]
    %v596 = vld [vmem:[#allocation2 + $0x148] sm:$0xff]
    %v597 = vld [vmem:[#allocation2 + $0x160] sm:$0xff]
    %v598 = vld [vmem:[#allocation2 + $0x178] sm:$0xff]
    %v599 = vld [vmem:[%s7 + $0x5] sm:$0x3]
    %v601 = vlaneseq
    %v602 = vshrl.u32 %v601, 7
    %v603 = vsub.s32 0, %v602
    %v604 = vrot.slane %v599, %v603
    %v605 = vlaneseq
    %v606 = vshrl.u32 %v605, 7
    %v607 = vsub.s32 1, %v606
    %v608 = vrot.slane %v599, %v607
    %v627 = vunpack.c.l.b16 %v583
    %v628 = vunpack.c.h.b16 %v583
    %v629 = vunpack.c.l.b16 %v584
    %v630 = vunpack.c.h.b16 %v584
    %v631 = vunpack.c.l.b16 %v585
    %v632 = vunpack.c.h.b16 %v585
    %v633 = vunpack.c.l.b16 %v586
    %v634 = vunpack.c.h.b16 %v586
    %v635 = vunpack.c.l.b16 %v587
    %v636 = vunpack.c.h.b16 %v587
    %v637 = vunpack.c.l.b16 %v588
    %v638 = vunpack.c.h.b16 %v588
    %v639 = vunpack.c.l.b16 %v589
    %v640 = vunpack.c.h.b16 %v589
    %v641 = vunpack.c.l.b16 %v590
    %v642 = vunpack.c.h.b16 %v590
    %v643 = vunpack.c.l.b16 %v591
    %v644 = vunpack.c.h.b16 %v591
    %v645 = vunpack.c.l.b16 %v592
    %v646 = vunpack.c.h.b16 %v592
    %v647 = vunpack.c.l.b16 %v593
    %v648 = vunpack.c.h.b16 %v593
    %v649 = vunpack.c.l.b16 %v594
    %v650 = vunpack.c.h.b16 %v594
    %v651 = vunpack.c.l.b16 %v595
    %v652 = vunpack.c.h.b16 %v595
    %v653 = vunpack.c.l.b16 %v596
    %v654 = vunpack.c.h.b16 %v596
    %v655 = vunpack.c.l.b16 %v597
    %v656 = vunpack.c.h.b16 %v597
    %v657 = vunpack.c.l.b16 %v598
    %v658 = vunpack.c.h.b16 %v598
    %v659 = vpack.c.b16 %v629, %v627
    %v660 = vpack.c.b16 %v630, %v628
    %v661 = vpack.c.b16 %v633, %v631
    %v662 = vpack.c.b16 %v634, %v632
    %v663 = vpack.c.b16 %v637, %v635
    %v664 = vpack.c.b16 %v638, %v636
    %v665 = vpack.c.b16 %v641, %v639
    %v666 = vpack.c.b16 %v642, %v640
    %v667 = vpack.c.b16 %v645, %v643
    %v668 = vpack.c.b16 %v646, %v644
    %v669 = vpack.c.b16 %v649, %v647
    %v670 = vpack.c.b16 %v650, %v648
    %v671 = vpack.c.b16 %v653, %v651
    %v672 = vpack.c.b16 %v654, %v652
    %v673 = vpack.c.b16 %v657, %v655
    %v674 = vpack.c.b16 %v658, %v656
    %691 = vmatprep.subr.bf16.mxu0 %v660
    %692 = vmatpush1.bf16.msra.mxu0 %v659
    %693 = vmatprep.subr.bf16.mxu0 %v662
    %694 = vmatpush1.bf16.msra.mxu0 %v661
    %695 = vmatprep.subr.bf16.mxu0 %v664
    %696 = vmatpush1.bf16.msra.mxu0 %v663
    %697 = vmatprep.subr.bf16.mxu0 %v666
    %698 = vmatpush1.bf16.msra.mxu0 %v665
    %699 = vmatprep.subr.bf16.mxu0 %v668
    %700 = vmatpush1.bf16.msra.mxu0 %v667
    %701 = vmatprep.subr.bf16.mxu0 %v670
    %702 = vmatpush1.bf16.msra.mxu0 %v669
    %703 = vmatprep.subr.bf16.mxu0 %v672
    %704 = vmatpush1.bf16.msra.mxu0 %v671
    %705 = vmatprep.subr.bf16.mxu0 %v674
    %706 = vmatpush1.bf16.msra.mxu0 %v673
    %707 = vmatprep.subr.bf16.mxu0 0
    %708 = vmatpush1.bf16.msra.mxu0 0
    %709 = vmatprep.subr.bf16.mxu0 0
    %710 = vmatpush1.bf16.msra.mxu0 0
    %711 = vmatprep.subr.bf16.mxu0 0
    %712 = vmatpush1.bf16.msra.mxu0 0
    %713 = vmatprep.subr.bf16.mxu0 0
    %714 = vmatpush1.bf16.msra.mxu0 0
    %715 = vmatprep.subr.bf16.mxu0 0
    %716 = vmatpush1.bf16.msra.mxu0 0
    %717 = vmatprep.subr.bf16.mxu0 0
    %718 = vmatpush1.bf16.msra.mxu0 0
    %719 = vmatprep.subr.bf16.mxu0 0
    %720 = vmatpush1.bf16.msra.mxu0 0
    %721 = vmatprep.subr.bf16.mxu0 0
    %722 = vmatpush1.bf16.msra.mxu0 0
    %723 = vmatprep.mubr.bf16.mxu0 0
    %724 = vmatmul.mubr.bf16.gmra.mrb[0].mxu0 %v270
    %v725 = vpop.f32.mrb[0].mxu0
    %v726 = vadd.f32 %v604, %v725
    %v727 = vpop.f32.mrb[0].mxu0
    %v728 = vadd.f32 %v608, %v727
    %v729 = vpop.f32.mrb[0].mxu0
    %v730 = vpop.f32.mrb[0].mxu0
    %731 = vdwg.mxu0
    %v732 = vld [vmem:[%s7 + $0x7] sm:$0x3]
    %v734 = vlaneseq
    %v735 = vshrl.u32 %v734, 7
    %v736 = vsub.s32 0, %v735
    %v737 = vrot.slane %v732, %v736
    %v738 = vlaneseq
    %v739 = vshrl.u32 %v738, 7
    %v740 = vsub.s32 1, %v739
    %v741 = vrot.slane %v732, %v740
    %v744 = vmul.f32 %v579, %v737
    %v745 = vmul.f32 %v580, %v741
    %v746 = vadd.f32 %v726, %v744
    %v747 = vadd.f32 %v728, %v745
    %v748 = vtanh.pop %v746
    %v749 = vtanh.pop %v747
    %v750 = vsub.f32 1.0, %v581
    %v751 = vsub.f32 1.0, %v582
    %v752 = vmul.f32 %v750, %v748
    %v753 = vmul.f32 %v751, %v749
    %v754 = vpack.c.bf16 %v752, %v752
    %v755 = vpack.c.bf16 %v753, %v753
    %v756 = vld [vmem:[#allocation5] sm:$0xff]
    %v757 = vld [vmem:[#allocation5 + $0xc] sm:$0xff]
    %v758 = vld [vmem:[#allocation5 + $0x18] sm:$0xff]
    %v759 = vld [vmem:[#allocation5 + $0x24] sm:$0xff]
    %v760 = vld [vmem:[#allocation5 + $0x30] sm:$0xff]
    %v761 = vld [vmem:[#allocation5 + $0x3c] sm:$0xff]
    %v762 = vld [vmem:[#allocation5 + $0x48] sm:$0xff]
    %v763 = vld [vmem:[#allocation5 + $0x54] sm:$0xff]
    %v764 = vld [vmem:[#allocation5 + $0x60] sm:$0xff]
    %v765 = vld [vmem:[#allocation5 + $0x6c] sm:$0xff]
    %v766 = vld [vmem:[#allocation5 + $0x78] sm:$0xff]
    %v767 = vld [vmem:[#allocation5 + $0x84] sm:$0xff]
    %v768 = vld [vmem:[#allocation5 + $0x90] sm:$0xff]
    %v769 = vld [vmem:[#allocation5 + $0x9c] sm:$0xff]
    %v770 = vld [vmem:[#allocation5 + $0xa8] sm:$0xff]
    %v771 = vld [vmem:[#allocation5 + $0xb4] sm:$0xff]
    %v772 = vld [vmem:[#allocation5 + $0xc0] sm:$0xff]
    %v773 = vld [vmem:[#allocation5 + $0xcc] sm:$0xff]
    %v774 = vld [vmem:[#allocation5 + $0xd8] sm:$0xff]
    %v775 = vld [vmem:[#allocation5 + $0xe4] sm:$0xff]
    %v776 = vld [vmem:[#allocation5 + $0xf0] sm:$0xff]
    %v777 = vld [vmem:[#allocation5 + $0xfc] sm:$0xff]
    %v778 = vld [vmem:[#allocation5 + $0x108] sm:$0xff]
    %v779 = vld [vmem:[#allocation5 + $0x114] sm:$0xff]
    %v780 = vld [vmem:[#allocation5 + $0x120] sm:$0xff]
    %v781 = vld [vmem:[#allocation5 + $0x12c] sm:$0xff]
    %v782 = vld [vmem:[#allocation5 + $0x138] sm:$0xff]
    %v783 = vld [vmem:[#allocation5 + $0x144] sm:$0xff]
    %v784 = vld [vmem:[#allocation5 + $0x150] sm:$0xff]
    %v785 = vld [vmem:[#allocation5 + $0x15c] sm:$0xff]
    %v786 = vld [vmem:[#allocation5 + $0x168] sm:$0xff]
    %v787 = vld [vmem:[#allocation5 + $0x174] sm:$0xff]
    %v788 = vld [vmem:[%s7 + $0x9] sm:$0x3]
    %v790 = vlaneseq
    %v791 = vshrl.u32 %v790, 7
    %v792 = vsub.s32 0, %v791
    %v793 = vrot.slane %v788, %v792
    %v794 = vlaneseq
    %v795 = vshrl.u32 %v794, 7
    %v796 = vsub.s32 1, %v795
    %v797 = vrot.slane %v788, %v796
    %v832 = vunpack.c.l.b16 %v756
    %v833 = vunpack.c.h.b16 %v756
    %v834 = vunpack.c.l.b16 %v757
    %v835 = vunpack.c.h.b16 %v757
    %v836 = vunpack.c.l.b16 %v758
    %v837 = vunpack.c.h.b16 %v758
    %v838 = vunpack.c.l.b16 %v759
    %v839 = vunpack.c.h.b16 %v759
    %v840 = vunpack.c.l.b16 %v760
    %v841 = vunpack.c.h.b16 %v760
    %v842 = vunpack.c.l.b16 %v761
    %v843 = vunpack.c.h.b16 %v761
    %v844 = vunpack.c.l.b16 %v762
    %v845 = vunpack.c.h.b16 %v762
    %v846 = vunpack.c.l.b16 %v763
    %v847 = vunpack.c.h.b16 %v763
    %v848 = vunpack.c.l.b16 %v764
    %v849 = vunpack.c.h.b16 %v764
    %v850 = vunpack.c.l.b16 %v765
    %v851 = vunpack.c.h.b16 %v765
    %v852 = vunpack.c.l.b16 %v766
    %v853 = vunpack.c.h.b16 %v766
    %v854 = vunpack.c.l.b16 %v767
    %v855 = vunpack.c.h.b16 %v767
    %v856 = vunpack.c.l.b16 %v768
    %v857 = vunpack.c.h.b16 %v768
    %v858 = vunpack.c.l.b16 %v769
    %v859 = vunpack.c.h.b16 %v769
    %v860 = vunpack.c.l.b16 %v770
    %v861 = vunpack.c.h.b16 %v770
    %v862 = vunpack.c.l.b16 %v771
    %v863 = vunpack.c.h.b16 %v771
    %v864 = vunpack.c.l.b16 %v772
    %v865 = vunpack.c.h.b16 %v772
    %v866 = vunpack.c.l.b16 %v773
    %v867 = vunpack.c.h.b16 %v773
    %v868 = vunpack.c.l.b16 %v774
    %v869 = vunpack.c.h.b16 %v774
    %v870 = vunpack.c.l.b16 %v775
    %v871 = vunpack.c.h.b16 %v775
    %v872 = vunpack.c.l.b16 %v776
    %v873 = vunpack.c.h.b16 %v776
    %v874 = vunpack.c.l.b16 %v777
    %v875 = vunpack.c.h.b16 %v777
    %v876 = vunpack.c.l.b16 %v778
    %v877 = vunpack.c.h.b16 %v778
    %v878 = vunpack.c.l.b16 %v779
    %v879 = vunpack.c.h.b16 %v779
    %v880 = vunpack.c.l.b16 %v780
    %v881 = vunpack.c.h.b16 %v780
    %v882 = vunpack.c.l.b16 %v781
    %v883 = vunpack.c.h.b16 %v781
    %v884 = vunpack.c.l.b16 %v782
    %v885 = vunpack.c.h.b16 %v782
    %v886 = vunpack.c.l.b16 %v783
    %v887 = vunpack.c.h.b16 %v783
    %v888 = vunpack.c.l.b16 %v784
    %v889 = vunpack.c.h.b16 %v784
    %v890 = vunpack.c.l.b16 %v785
    %v891 = vunpack.c.h.b16 %v785
    %v892 = vunpack.c.l.b16 %v786
    %v893 = vunpack.c.h.b16 %v786
    %v894 = vunpack.c.l.b16 %v787
    %v895 = vunpack.c.h.b16 %v787
    %v896 = vpack.c.b16 %v834, %v832
    %v897 = vpack.c.b16 %v835, %v833
    %v898 = vpack.c.b16 %v838, %v836
    %v899 = vpack.c.b16 %v839, %v837
    %v900 = vpack.c.b16 %v842, %v840
    %v901 = vpack.c.b16 %v843, %v841
    %v902 = vpack.c.b16 %v846, %v844
    %v903 = vpack.c.b16 %v847, %v845
    %v904 = vpack.c.b16 %v850, %v848
    %v905 = vpack.c.b16 %v851, %v849
    %v906 = vpack.c.b16 %v854, %v852
    %v907 = vpack.c.b16 %v855, %v853
    %v908 = vpack.c.b16 %v858, %v856
    %v909 = vpack.c.b16 %v859, %v857
    %v910 = vpack.c.b16 %v862, %v860
    %v911 = vpack.c.b16 %v863, %v861
    %v912 = vpack.c.b16 %v866, %v864
    %v913 = vpack.c.b16 %v867, %v865
    %v914 = vpack.c.b16 %v870, %v868
    %v915 = vpack.c.b16 %v871, %v869
    %v916 = vpack.c.b16 %v874, %v872
    %v917 = vpack.c.b16 %v875, %v873
    %v918 = vpack.c.b16 %v878, %v876
    %v919 = vpack.c.b16 %v879, %v877
    %v920 = vpack.c.b16 %v882, %v880
    %v921 = vpack.c.b16 %v883, %v881
    %v922 = vpack.c.b16 %v886, %v884
    %v923 = vpack.c.b16 %v887, %v885
    %v924 = vpack.c.b16 %v890, %v888
    %v925 = vpack.c.b16 %v891, %v889
    %v926 = vpack.c.b16 %v894, %v892
    %v927 = vpack.c.b16 %v895, %v893
    %960 = vmatprep.subr.bf16.mxu0 %v897
    %961 = vmatpush1.bf16.msra.mxu0 %v896
    %962 = vmatprep.subr.bf16.mxu0 %v899
    %963 = vmatpush1.bf16.msra.mxu0 %v898
    %964 = vmatprep.subr.bf16.mxu0 %v901
    %965 = vmatpush1.bf16.msra.mxu0 %v900
    %966 = vmatprep.subr.bf16.mxu0 %v903
    %967 = vmatpush1.bf16.msra.mxu0 %v902
    %968 = vmatprep.subr.bf16.mxu0 %v905
    %969 = vmatpush1.bf16.msra.mxu0 %v904
    %970 = vmatprep.subr.bf16.mxu0 %v907
    %971 = vmatpush1.bf16.msra.mxu0 %v906
    %972 = vmatprep.subr.bf16.mxu0 %v909
    %973 = vmatpush1.bf16.msra.mxu0 %v908
    %974 = vmatprep.subr.bf16.mxu0 %v911
    %975 = vmatpush1.bf16.msra.mxu0 %v910
    %976 = vmatprep.subr.bf16.mxu0 %v913
    %977 = vmatpush1.bf16.msra.mxu0 %v912
    %978 = vmatprep.subr.bf16.mxu0 %v915
    %979 = vmatpush1.bf16.msra.mxu0 %v914
    %980 = vmatprep.subr.bf16.mxu0 %v917
    %981 = vmatpush1.bf16.msra.mxu0 %v916
    %982 = vmatprep.subr.bf16.mxu0 %v919
    %983 = vmatpush1.bf16.msra.mxu0 %v918
    %984 = vmatprep.subr.bf16.mxu0 %v921
    %985 = vmatpush1.bf16.msra.mxu0 %v920
    %986 = vmatprep.subr.bf16.mxu0 %v923
    %987 = vmatpush1.bf16.msra.mxu0 %v922
    %988 = vmatprep.subr.bf16.mxu0 %v925
    %989 = vmatpush1.bf16.msra.mxu0 %v924
    %990 = vmatprep.subr.bf16.mxu0 %v927
    %991 = vmatpush1.bf16.msra.mxu0 %v926
    %992 = vmatprep.mubr.bf16.mxu0 %v755
    %993 = vmatmul.mubr.bf16.gmra.mrb[0].mxu0 %v754
    %v994 = vpop.f32.mrb[0].mxu0
    %v995 = vadd.f32 %v793, %v994
    %v996 = vpop.f32.mrb[0].mxu0
    %v997 = vadd.f32 %v797, %v996
    %v998 = vpop.f32.mrb[0].mxu0
    %v999 = vpop.f32.mrb[0].mxu0
    %1000 = vdwg.mxu0
    %v1001 = vmul.f32 %v995, 0.5
    %v1002 = vmul.f32 %v997, 0.5
    %v1003 = vtanh.pop %v1001
    %v1004 = vtanh.pop %v1002
    %v1005 = vmul.f32 %v1003, 0.5
    %v1006 = vmul.f32 %v1004, 0.5
    %v1007 = vadd.f32 %v1005, 0.5
    %v1008 = vadd.f32 %v1006, 0.5
    %v1009 = vld [vmem:[#allocation5 + $0x8] sm:$0xf]
    %v1010 = vld [vmem:[#allocation5 + $0x14] sm:$0xf]
    %v1011 = vld [vmem:[#allocation5 + $0x20] sm:$0xf]
    %v1012 = vld [vmem:[#allocation5 + $0x2c] sm:$0xf]
    %v1013 = vld [vmem:[#allocation5 + $0x38] sm:$0xf]
    %v1014 = vld [vmem:[#allocation5 + $0x44] sm:$0xf]
    %v1015 = vld [vmem:[#allocation5 + $0x50] sm:$0xf]
    %v1016 = vld [vmem:[#allocation5 + $0x5c] sm:$0xf]
    %v1017 = vld [vmem:[#allocation5 + $0x68] sm:$0xf]
    %v1018 = vld [vmem:[#allocation5 + $0x74] sm:$0xf]
    %v1019 = vld [vmem:[#allocation5 + $0x80] sm:$0xf]
    %v1020 = vld [vmem:[#allocation5 + $0x8c] sm:$0xf]
    %v1021 = vld [vmem:[#allocation5 + $0x98] sm:$0xf]
    %v1022 = vld [vmem:[#allocation5 + $0xa4] sm:$0xf]
    %v1023 = vld [vmem:[#allocation5 + $0xb0] sm:$0xf]
    %v1024 = vld [vmem:[#allocation5 + $0xbc] sm:$0xf]
    %v1025 = vld [vmem:[#allocation5 + $0xc8] sm:$0xf]
    %v1026 = vld [vmem:[#allocation5 + $0xd4] sm:$0xf]
    %v1027 = vld [vmem:[#allocation5 + $0xe0] sm:$0xf]
    %v1028 = vld [vmem:[#allocation5 + $0xec] sm:$0xf]
    %v1029 = vld [vmem:[#allocation5 + $0xf8] sm:$0xf]
    %v1030 = vld [vmem:[#allocation5 + $0x104] sm:$0xf]
    %v1031 = vld [vmem:[#allocation5 + $0x110] sm:$0xf]
    %v1032 = vld [vmem:[#allocation5 + $0x11c] sm:$0xf]
    %v1033 = vld [vmem:[#allocation5 + $0x128] sm:$0xf]
    %v1034 = vld [vmem:[#allocation5 + $0x134] sm:$0xf]
    %v1035 = vld [vmem:[#allocation5 + $0x140] sm:$0xf]
    %v1036 = vld [vmem:[#allocation5 + $0x14c] sm:$0xf]
    %v1037 = vld [vmem:[#allocation5 + $0x158] sm:$0xf]
    %v1038 = vld [vmem:[#allocation5 + $0x164] sm:$0xf]
    %v1039 = vld [vmem:[#allocation5 + $0x170] sm:$0xf]
    %v1040 = vld [vmem:[#allocation5 + $0x17c] sm:$0xf]
    %v1041 = vld [vmem:[%s7 + $0xb] sm:$0x1]
    %v1043 = vlaneseq
    %v1044 = vshrl.u32 %v1043, 7
    %v1045 = vsub.s32 0, %v1044
    %v1046 = vrot.slane %v1041, %v1045
    %v1080 = vunpack.c.l.b16 %v1009
    %v1081 = vunpack.c.l.b16 %v1010
    %v1082 = vunpack.c.l.b16 %v1011
    %v1083 = vunpack.c.l.b16 %v1012
    %v1084 = vunpack.c.l.b16 %v1013
    %v1085 = vunpack.c.l.b16 %v1014
    %v1086 = vunpack.c.l.b16 %v1015
    %v1087 = vunpack.c.l.b16 %v1016
    %v1088 = vunpack.c.l.b16 %v1017
    %v1089 = vunpack.c.l.b16 %v1018
    %v1090 = vunpack.c.l.b16 %v1019
    %v1091 = vunpack.c.l.b16 %v1020
    %v1092 = vunpack.c.l.b16 %v1021
    %v1093 = vunpack.c.l.b16 %v1022
    %v1094 = vunpack.c.l.b16 %v1023
    %v1095 = vunpack.c.l.b16 %v1024
    %v1096 = vunpack.c.l.b16 %v1025
    %v1097 = vunpack.c.l.b16 %v1026
    %v1098 = vunpack.c.l.b16 %v1027
    %v1099 = vunpack.c.l.b16 %v1028
    %v1100 = vunpack.c.l.b16 %v1029
    %v1101 = vunpack.c.l.b16 %v1030
    %v1102 = vunpack.c.l.b16 %v1031
    %v1103 = vunpack.c.l.b16 %v1032
    %v1104 = vunpack.c.l.b16 %v1033
    %v1105 = vunpack.c.l.b16 %v1034
    %v1106 = vunpack.c.l.b16 %v1035
    %v1107 = vunpack.c.l.b16 %v1036
    %v1108 = vunpack.c.l.b16 %v1037
    %v1109 = vunpack.c.l.b16 %v1038
    %v1110 = vunpack.c.l.b16 %v1039
    %v1111 = vunpack.c.l.b16 %v1040
    %v1112 = vpack.c.b16 %v1081, %v1080
    %v1113 = vpack.c.b16 %v1083, %v1082
    %v1114 = vpack.c.b16 %v1085, %v1084
    %v1115 = vpack.c.b16 %v1087, %v1086
    %v1116 = vpack.c.b16 %v1089, %v1088
    %v1117 = vpack.c.b16 %v1091, %v1090
    %v1118 = vpack.c.b16 %v1093, %v1092
    %v1119 = vpack.c.b16 %v1095, %v1094
    %v1120 = vpack.c.b16 %v1097, %v1096
    %v1121 = vpack.c.b16 %v1099, %v1098
    %v1122 = vpack.c.b16 %v1101, %v1100
    %v1123 = vpack.c.b16 %v1103, %v1102
    %v1124 = vpack.c.b16 %v1105, %v1104
    %v1125 = vpack.c.b16 %v1107, %v1106
    %v1126 = vpack.c.b16 %v1109, %v1108
    %v1127 = vpack.c.b16 %v1111, %v1110
    %1144 = vmatprep.subr.bf16.mxu0 0
    %1145 = vmatpush1.bf16.msra.mxu0 %v1112
    %1146 = vmatprep.subr.bf16.mxu0 0
    %1147 = vmatpush1.bf16.msra.mxu0 %v1113
    %1148 = vmatprep.subr.bf16.mxu0 0
    %1149 = vmatpush1.bf16.msra.mxu0 %v1114
    %1150 = vmatprep.subr.bf16.mxu0 0
    %1151 = vmatpush1.bf16.msra.mxu0 %v1115
    %1152 = vmatprep.subr.bf16.mxu0 0
    %1153 = vmatpush1.bf16.msra.mxu0 %v1116
    %1154 = vmatprep.subr.bf16.mxu0 0
    %1155 = vmatpush1.bf16.msra.mxu0 %v1117
    %1156 = vmatprep.subr.bf16.mxu0 0
    %1157 = vmatpush1.bf16.msra.mxu0 %v1118
    %1158 = vmatprep.subr.bf16.mxu0 0
    %1159 = vmatpush1.bf16.msra.mxu0 %v1119
    %1160 = vmatprep.subr.bf16.mxu0 0
    %1161 = vmatpush1.bf16.msra.mxu0 %v1120
    %1162 = vmatprep.subr.bf16.mxu0 0
    %1163 = vmatpush1.bf16.msra.mxu0 %v1121
    %1164 = vmatprep.subr.bf16.mxu0 0
    %1165 = vmatpush1.bf16.msra.mxu0 %v1122
    %1166 = vmatprep.subr.bf16.mxu0 0
    %1167 = vmatpush1.bf16.msra.mxu0 %v1123
    %1168 = vmatprep.subr.bf16.mxu0 0
    %1169 = vmatpush1.bf16.msra.mxu0 %v1124
    %1170 = vmatprep.subr.bf16.mxu0 0
    %1171 = vmatpush1.bf16.msra.mxu0 %v1125
    %1172 = vmatprep.subr.bf16.mxu0 0
    %1173 = vmatpush1.bf16.msra.mxu0 %v1126
    %1174 = vmatprep.subr.bf16.mxu0 0
    %1175 = vmatpush1.bf16.msra.mxu0 %v1127
    %1176 = vmatprep.mubr.bf16.mxu0 %v755
    %1177 = vmatmul.mubr.bf16.gmra.mrb[0].mxu0 %v754
    %v1178 = vpop.f32.mrb[0].mxu0
    %v1179 = vadd.f32 %v1046, %v1178
    %v1180 = vpop.f32.mrb[0].mxu0
    %v1181 = vpop.f32.mrb[0].mxu0
    %v1182 = vpop.f32.mrb[0].mxu0
    %1183 = vdwg.mxu0
    %v1184 = vld [vmem:[%s7 + $0xc] sm:$0x1]
    %v1186 = vlaneseq
    %v1187 = vshrl.u32 %v1186, 7
    %v1188 = vsub.s32 0, %v1187
    %v1189 = vrot.slane %v1184, %v1188
    %v1191 = vmul.f32 %v1007, %v1189
    %v1192 = vadd.f32 %v1179, %v1191
    %v1193 = vtanh.pop %v1192
    %v1194 = vsub.f32 1.0, %v1008
    %v1195 = vmul.f32 %v1194, %v1193
    %v1196 = vpack.c.bf16 %v1195, %v1195
    %v1197 = vld [vmem:[#allocation7] sm:$0xf]
    %v1198 = vld [vmem:[#allocation7 + $0x4] sm:$0xf]
    %v1199 = vld [vmem:[#allocation7 + $0x8] sm:$0xf]
    %v1200 = vld [vmem:[#allocation7 + $0xc] sm:$0xf]
    %v1201 = vld [vmem:[#allocation7 + $0x10] sm:$0xf]
    %v1202 = vld [vmem:[#allocation7 + $0x14] sm:$0xf]
    %v1203 = vld [vmem:[#allocation7 + $0x18] sm:$0xf]
    %v1204 = vld [vmem:[#allocation7 + $0x1c] sm:$0xf]
    %v1205 = vld [vmem:[#allocation7 + $0x20] sm:$0xf]
    %v1206 = vld [vmem:[#allocation7 + $0x24] sm:$0xf]
    %v1207 = vld [vmem:[#allocation7 + $0x28] sm:$0xf]
    %v1208 = vld [vmem:[#allocation7 + $0x2c] sm:$0xf]
    %v1209 = vld [vmem:[#allocation7 + $0x30] sm:$0xf]
    %v1210 = vld [vmem:[#allocation7 + $0x34] sm:$0xf]
    %v1211 = vld [vmem:[#allocation7 + $0x38] sm:$0xf]
    %v1212 = vld [vmem:[#allocation7 + $0x3c] sm:$0xf]
    %v1213 = vld [vmem:[%s7 + $0xd] sm:$0x1]
    %v1215 = vlaneseq
    %v1216 = vshrl.u32 %v1215, 7
    %v1217 = vsub.s32 0, %v1216
    %v1218 = vrot.slane %v1213, %v1217
    %v1236 = vunpack.c.l.b16 %v1197
    %v1237 = vunpack.c.l.b16 %v1198
    %v1238 = vunpack.c.l.b16 %v1199
    %v1239 = vunpack.c.l.b16 %v1200
    %v1240 = vunpack.c.l.b16 %v1201
    %v1241 = vunpack.c.l.b16 %v1202
    %v1242 = vunpack.c.l.b16 %v1203
    %v1243 = vunpack.c.l.b16 %v1204
    %v1244 = vunpack.c.l.b16 %v1205
    %v1245 = vunpack.c.l.b16 %v1206
    %v1246 = vunpack.c.l.b16 %v1207
    %v1247 = vunpack.c.l.b16 %v1208
    %v1248 = vunpack.c.l.b16 %v1209
    %v1249 = vunpack.c.l.b16 %v1210
    %v1250 = vunpack.c.l.b16 %v1211
    %v1251 = vunpack.c.l.b16 %v1212
    %v1252 = vpack.c.b16 %v1237, %v1236
    %v1253 = vpack.c.b16 %v1239, %v1238
    %v1254 = vpack.c.b16 %v1241, %v1240
    %v1255 = vpack.c.b16 %v1243, %v1242
    %v1256 = vpack.c.b16 %v1245, %v1244
    %v1257 = vpack.c.b16 %v1247, %v1246
    %v1258 = vpack.c.b16 %v1249, %v1248
    %v1259 = vpack.c.b16 %v1251, %v1250
    %1268 = vmatprep.subr.bf16.mxu0 0
    %1269 = vmatpush1.bf16.msra.mxu0 %v1252
    %1270 = vmatprep.subr.bf16.mxu0 0
    %1271 = vmatpush1.bf16.msra.mxu0 %v1253
    %1272 = vmatprep.subr.bf16.mxu0 0
    %1273 = vmatpush1.bf16.msra.mxu0 %v1254
    %1274 = vmatprep.subr.bf16.mxu0 0
    %1275 = vmatpush1.bf16.msra.mxu0 %v1255
    %1276 = vmatprep.subr.bf16.mxu0 0
    %1277 = vmatpush1.bf16.msra.mxu0 %v1256
    %1278 = vmatprep.subr.bf16.mxu0 0
    %1279 = vmatpush1.bf16.msra.mxu0 %v1257
    %1280 = vmatprep.subr.bf16.mxu0 0
    %1281 = vmatpush1.bf16.msra.mxu0 %v1258
    %1282 = vmatprep.subr.bf16.mxu0 0
    %1283 = vmatpush1.bf16.msra.mxu0 %v1259
    %1284 = vmatprep.subr.bf16.mxu0 0
    %1285 = vmatpush1.bf16.msra.mxu0 0
    %1286 = vmatprep.subr.bf16.mxu0 0
    %1287 = vmatpush1.bf16.msra.mxu0 0
    %1288 = vmatprep.subr.bf16.mxu0 0
    %1289 = vmatpush1.bf16.msra.mxu0 0
    %1290 = vmatprep.subr.bf16.mxu0 0
    %1291 = vmatpush1.bf16.msra.mxu0 0
    %1292 = vmatprep.subr.bf16.mxu0 0
    %1293 = vmatpush1.bf16.msra.mxu0 0
    %1294 = vmatprep.subr.bf16.mxu0 0
    %1295 = vmatpush1.bf16.msra.mxu0 0
    %1296 = vmatprep.subr.bf16.mxu0 0
    %1297 = vmatpush1.bf16.msra.mxu0 0
    %1298 = vmatprep.subr.bf16.mxu0 0
    %1299 = vmatpush1.bf16.msra.mxu0 0
    %1300 = vmatprep.mubr.bf16.mxu0 0
    %1301 = vmatmul.mubr.bf16.gmra.mrb[0].mxu0 %v1196
    %v1302 = vpop.f32.mrb[0].mxu0
    %v1303 = vadd.f32 %v1218, %v1302
    %v1304 = vpop.f32.mrb[0].mxu0
    %v1305 = vpop.f32.mrb[0].mxu0
    %v1306 = vpop.f32.mrb[0].mxu0
    %1307 = vdwg.mxu0
    %1308 = vst [vmem:[#allocation8] sm:$0xff] %v1303
    // Predicated region
    $region46: #{score_model_forward.1} parent=1 // pred_check
      _
    $region47: #{score_model_forward.1} parent=1 // pred_check_branch
      %1310 = sbr.rel (0) target = $region49
    $region48: #{score_model_forward.1} parent=1 // pred_region
      %s1312 = ssub.s32 128, 128
      %1313 = vsyncadd [#allocation4], %s1312
      %s1315 = sshll.u32 [#allocation8], 4
      %s1316 = int_to_ptr.vmem [resolvable:$true] %s1315
      %1318 = dma.vmem_to_hbm [thread:$0]  %s1316, 128, %s8, [#allocation4]
    $region49: #{score_model_forward.1} parent=1 // pred_fallthru
      _
    // Predicated region
    $region50: #{score_model_forward.1} parent=1 // pred_check
      _
    $region51: #{score_model_forward.1} parent=1 // pred_check_branch
      %1320 = sbr.rel (0) target = $region53
    $region52: #{score_model_forward.1} parent=1 // pred_region
      %1321 = dma.done [#allocation4], 128
    $region53: #{score_model_forward.1} parent=1 // pred_fallthru
      _
    %1322 = vsyncpa [#allocation3], 1
    %1323 = vsyncpa [#allocation6], 1
    %1324 = vsyncpa [#allocation4], 1

</llo_original>
